<compile_context>
chip_gen: v6e
topology: v6e:2x2x1
jax: 0.10.0
libtpu: 0.0.40
codegen_flags: <defaults>
</compile_context>

<pallas_src>
import jax
import jax.numpy as jnp
from jax.experimental import pallas as pl
from jax.experimental.pallas import tpu as pltpu


# ----------------------------- model hyper-params ---------------------------
EMBEDDING_NUM = 50      # opt['embedding_num']   (V)
EMBEDDING_DIM = 32      # opt['embedding_dim']   (E)
CONTENT_DIM = 16        # opt['content_dim']     (C)
CONTENT_SEQ_LEN = 8     # opt['content_seq_len'] (L)
LINEAR_HIDDEN = 32      # opt['linear_hidden_size'] (H)
KERNEL_SIZES = (1, 2)
BN_EPS = 1e-5
BATCH = 2

B_BLOCK_MAX = 1024      # max samples (lane columns) per grid step


# ------------------------------- Pallas kernel ------------------------------
def _max_pool_t(gT, bb):
    """Max over all positions (MaxPool1d over the remaining length), tree-reduced."""
    p = gT.shape[1] // bb
    blocks = [gT[:, t * bb:(t + 1) * bb] for t in range(p)]
    while len(blocks) > 1:
        nxt = [jnp.maximum(blocks[i], blocks[i + 1])
               for i in range(0, len(blocks) - 1, 2)]
        if len(blocks) % 2:
            nxt.append(blocks[-1])
        blocks = nxt
    return blocks[0]                                              # (C, bb)


def _multicnn_kernel(ids_ref, embT_ref, w1s_ref, *rest):
    nb = len(KERNEL_SIZES)
    out_ref = rest[-1]
    bf2_ref = rest[-2]
    wf2_ref = rest[-3]
    bf1_ref = rest[-4]
    wf1_refs = rest[-4 - nb:-4]
    branch_refs = rest[:3 * nb]                                   # (b1, w2s, b2) / branch

    C = CONTENT_DIM
    L = CONTENT_SEQ_LEN
    bb = out_ref.shape[1]
    V = embT_ref.shape[1]

    # ---- embedding lookup as a one-hot matmul (batch on the lane axis) ----
    ids_row = ids_ref[...]                                        # (1, L*bb) int32
    iota_v = jax.lax.broadcasted_iota(jnp.int32, (V, L * bb), 0)
    onehot = (iota_v == ids_row).astype(jnp.float32)              # (V, L*bb)
    xT = jnp.dot(embT_ref[...], onehot,
                 preferred_element_type=jnp.float32)              # (E, L*bb)

    # ---- conv1: ONE stacked matmul for every tap of every branch ----
    y1 = jnp.dot(w1s_ref[...], xT,
                 preferred_element_type=jnp.float32)              # (sum(k)*C, L*bb)

    pooled = []
    row = 0
    for bi, k in enumerate(KERNEL_SIZES):
        b1_ref, w2s_ref, b2_ref = branch_refs[3 * bi:3 * bi + 3]
        p1 = L - k + 1
        # whole-width, lane-aligned shifted adds (no per-position concatenate)
        h = y1[row:row + C, 0:p1 * bb]
        for j in range(1, k):
            h = h + y1[row + j * C:row + (j + 1) * C, j * bb:(j + p1) * bb]
        row += k * C
        h = jnp.maximum(h + b1_ref[...], 0.0)                     # (C, p1*bb)

        # ---- conv2: one stacked matmul for this branch's taps ----
        y2 = jnp.dot(w2s_ref[...], h,
                     preferred_element_type=jnp.float32)          # (k*2C, p1*bb)
        p2 = p1 - k + 1
        g = y2[0:2 * C, 0:p2 * bb]
        for j in range(1, k):
            g = g + y2[j * 2 * C:(j + 1) * 2 * C, j * bb:(j + p2) * bb]
        g = jnp.maximum(g + b2_ref[...], 0.0)                     # (2C, p2*bb)

        pooled.append(_max_pool_t(g, bb))                         # (2C, bb)

    # ---- fc head: per-branch matmuls summed (no feature concatenate) ----
    hpre = jnp.dot(wf1_refs[0][...], pooled[0], preferred_element_type=jnp.float32)
    for i in range(1, nb):
        hpre = hpre + jnp.dot(wf1_refs[i][...], pooled[i],
                              preferred_element_type=jnp.float32)
    hT = jnp.maximum(hpre + bf1_ref[...], 0.0)                    # (H, bb)

    # final logits: VPU weighted row-sum instead of a 1-row MXU push
    logitsT = jnp.sum(hT * wf2_ref[...], axis=0, keepdims=True) + bf2_ref[...]  # (1, bb)
    out_ref[...] = jax.nn.sigmoid(logitsT)


# --------------------------- parameters & folding ----------------------------
def _init_bn(key, c):
    k1, k2, k3, k4 = jax.random.split(key, 4)
    return {
        "gamma": 1.0 + 0.1 * jax.random.normal(k1, (c,), jnp.float32),
        "beta": 0.1 * jax.random.normal(k2, (c,), jnp.float32),
        "mean": 0.1 * jax.random.normal(k3, (c,), jnp.float32),
        "var": 1.0 + 0.1 * jax.random.uniform(k4, (c,), jnp.float32),
    }


def init_params(key):
    ks = jax.random.split(key, 24)
    scale = 0.25

    def norm(k, shape):
        return scale * jax.random.normal(k, shape, jnp.float32)

    emb = norm(ks[0], (EMBEDDING_NUM, EMBEDDING_DIM)).at[0].set(0.0)  # padding_idx=0
    params = {"emb": emb, "branches": [], "fc": {}}
    i = 1
    C = CONTENT_DIM
    for k in KERNEL_SIZES:
        params["branches"].append({
            "w1": norm(ks[i], (C, EMBEDDING_DIM, k)), "b1": norm(ks[i + 1], (C,)),
            "bn1": _init_bn(ks[i + 2], C),
            "w2": norm(ks[i + 3], (2 * C, C, k)), "b2": norm(ks[i + 4], (2 * C,)),
            "bn2": _init_bn(ks[i + 5], 2 * C),
        })
        i += 6
    feat = len(KERNEL_SIZES) * 2 * C
    params["fc"] = {
        "wf1": norm(ks[i], (LINEAR_HIDDEN, feat)), "bf1": norm(ks[i + 1], (LINEAR_HIDDEN,)),
        "bnf": _init_bn(ks[i + 2], LINEAR_HIDDEN),
        "wf2": norm(ks[i + 3], (1, LINEAR_HIDDEN)), "bf2": norm(ks[i + 4], (1,)),
    }
    return params


def _bn_scale_shift(bn):
    s = bn["gamma"] / jnp.sqrt(bn["var"] + BN_EPS)
    t = bn["beta"] - bn["mean"] * s
    return s, t


def _kernel_args(params):
    """Fold inference BN + biases into transposed, M-stacked weights."""
    C = CONTENT_DIM
    embT = params["emb"].T                                            # (E, V)
    w1_blocks, per_branch = [], []
    for k, br in zip(KERNEL_SIZES, params["branches"]):
        s1, t1 = _bn_scale_shift(br["bn1"])
        s2, t2 = _bn_scale_shift(br["bn2"])
        for j in range(k):
            w1_blocks.append(br["w1"][:, :, j] * s1[:, None])         # (C, E) per tap
        b1 = (br["b1"] * s1 + t1)[:, None]                            # (C, 1)
        w2s = jnp.concatenate([br["w2"][:, :, j] * s2[:, None] for j in range(k)],
                              axis=0)                                 # (k*2C, C)
        b2 = (br["b2"] * s2 + t2)[:, None]                            # (2C, 1)
        per_branch += [b1, w2s, b2]
    w1s = jnp.concatenate(w1_blocks, axis=0)                          # (sum(k)*C, E)

    fc = params["fc"]
    sf, tf = _bn_scale_shift(fc["bnf"])
    wf1 = fc["wf1"] * sf[:, None]                                     # (H, nb*2C)
    wf1_parts = [wf1[:, bi * 2 * C:(bi + 1) * 2 * C]
                 for bi in range(len(KERNEL_SIZES))]                  # (H, 2C) each
    bf1 = (fc["bf1"] * sf + tf)[:, None]                              # (H, 1)
    wf2 = fc["wf2"].T                                                 # (H, 1)
    bf2 = fc["bf2"][:, None]                                          # (1, 1)
    return [embT, w1s] + per_branch + wf1_parts + [bf1, wf2, bf2]


def _build_in_specs(bb):
    C = CONTENT_DIM
    tot_taps = sum(KERNEL_SIZES)
    specs = [
        pl.BlockSpec((1, CONTENT_SEQ_LEN * bb), lambda i: (0, i)),         # ids (flat)
        pl.BlockSpec((EMBEDDING_DIM, EMBEDDING_NUM), lambda i: (0, 0)),    # embT
        pl.BlockSpec((tot_taps * C, EMBEDDING_DIM), lambda i: (0, 0)),     # stacked w1
    ]
    for k in KERNEL_SIZES:
        specs += [
            pl.BlockSpec((C, 1), lambda i: (0, 0)),                        # b1
            pl.BlockSpec((k * 2 * C, C), lambda i: (0, 0)),                # stacked w2
            pl.BlockSpec((2 * C, 1), lambda i: (0, 0)),                    # b2
        ]
    for _ in KERNEL_SIZES:
        specs.append(pl.BlockSpec((LINEAR_HIDDEN, 2 * C), lambda i: (0, 0)))  # wf1 slice
    specs += [
        pl.BlockSpec((LINEAR_HIDDEN, 1), lambda i: (0, 0)),                # bf1
        pl.BlockSpec((LINEAR_HIDDEN, 1), lambda i: (0, 0)),                # wf2 (column)
        pl.BlockSpec((1, 1), lambda i: (0, 0)),                            # bf2
    ]
    return specs


def _cost_estimate(b_pad):
    L, E, V = CONTENT_SEQ_LEN, EMBEDDING_DIM, EMBEDDING_NUM
    C, H = CONTENT_DIM, LINEAR_HIDDEN
    flops = 2 * E * V * L * b_pad                        # one-hot embedding matmul
    flops += 2 * sum(KERNEL_SIZES) * C * E * L * b_pad   # stacked conv1
    for k in KERNEL_SIZES:
        flops += 2 * k * (2 * C) * C * (L - k + 1) * b_pad
        flops += 2 * H * (2 * C) * b_pad
    flops += 2 * H * b_pad
    weight_bytes = 4 * (V * E + H * 4 * C + 2 * H + 1
                        + sum(k * C * E + C + k * 2 * C * C + 2 * C for k in KERNEL_SIZES))
    bytes_accessed = b_pad * (4 * L + 4) + weight_bytes
    return pl.CostEstimate(flops=flops, transcendentals=b_pad,
                           bytes_accessed=bytes_accessed)


# ------------------------------- wrapper (glue) ------------------------------
@jax.jit
def multi_cnn_text_forward(content_ids, params):
    B, L = content_ids.shape
    # adaptive block: multiple of 128, <= B_BLOCK_MAX; keep grid >= 2 when the batch
    # is large enough so v7x's second TensorCore gets work via the "parallel" axis.
    bb = min(B_BLOCK_MAX, pl.cdiv(B, 128) * 128)
    if pl.cdiv(B, bb) == 1 and bb >= 256:
        bb = pl.cdiv(pl.cdiv(B, 2), 128) * 128
    n_blocks = pl.cdiv(B, bb)
    b_pad = n_blocks * bb

    # pre-flatten ids position-major within each block: (1, n_blocks * L * bb)
    ids_pad = jnp.zeros((b_pad, L), jnp.int32).at[:B].set(content_ids.astype(jnp.int32))
    ids_flat = (ids_pad.reshape(n_blocks, bb, L)
                .transpose(0, 2, 1)
                .reshape(1, n_blocks * L * bb))

    args = _kernel_args(params)

    out = pl.pallas_call(
        _multicnn_kernel,
        grid=(n_blocks,),
        out_shape=jax.ShapeDtypeStruct((1, b_pad), jnp.float32),
        in_specs=_build_in_specs(bb),
        out_specs=pl.BlockSpec((1, bb), lambda i: (0, i)),
        compiler_params=pltpu.CompilerParams(
            dimension_semantics=("parallel",),
            vmem_limit_bytes=32 * 1024 * 1024),
        cost_estimate=_cost_estimate(b_pad),
    )(ids_flat, *args)
    return out[0, :B].reshape(B, 1)


# -------------------------- pure-JAX reference check -------------------------
def _bn_inf(x, bn):
    s = bn["gamma"] / jnp.sqrt(bn["var"] + BN_EPS)
    return (x - bn["mean"]) * s + bn["beta"]


def _reference_forward(content_ids, params):
    x = params["emb"][content_ids]                               # (B, L, E)
    _, L, _ = x.shape
    outs = []
    for k, br in zip(KERNEL_SIZES, params["branches"]):
        L1 = L - k + 1
        h = sum(jnp.einsum("ble,ce->blc", x[:, j:j + L1, :], br["w1"][:, :, j])
                for j in range(k)) + br["b1"]
        h = jnp.maximum(_bn_inf(h, br["bn1"]), 0.0)
        L2 = L1 - k + 1
        g = sum(jnp.einsum("blc,dc->bld", h[:, j:j + L2, :], br["w2"][:, :, j])
                for j in range(k)) + br["b2"]
        g = jnp.maximum(_bn_inf(g, br["bn2"]), 0.0)
        outs.append(jnp.max(g, axis=1))                          # MaxPool over L-2k+2
    feat = jnp.concatenate(outs, axis=-1)
    fc = params["fc"]
    h = feat @ fc["wf1"].T + fc["bf1"]
    h = jnp.maximum(_bn_inf(h, fc["bnf"]), 0.0)
    logits = h @ fc["wf2"].T + fc["bf2"]
    return jax.nn.sigmoid(logits)


# ------------------------------------ main -----------------------------------
if __name__ == "__main__":
    key = jax.random.PRNGKey(0)
    pkey, dkey = jax.random.split(key)
    params = init_params(pkey)
    content = jax.random.randint(dkey, (BATCH, CONTENT_SEQ_LEN), 0, EMBEDDING_NUM,
                                 dtype=jnp.int32)

    out = jax.block_until_ready(multi_cnn_text_forward(content, params))
    ref = _reference_forward(content, params)

    assert out.shape == (BATCH, 1), out.shape
    assert jnp.allclose(out, ref, atol=3e-3), (out, ref)
    print("KERNEL_OK")
</pallas_src>

<mosaic_0001>
module attributes {stable_mosaic.version = 11 : i64} {
  func.func @_multicnn_kernel(%arg0: i32, %arg1: memref<1x1024xi32, #tpu.memory_space<vmem>>, %arg2: memref<32x50xf32, #tpu.memory_space<vmem>>, %arg3: memref<48x32xf32, #tpu.memory_space<vmem>>, %arg4: memref<16x1xf32, #tpu.memory_space<vmem>>, %arg5: memref<32x16xf32, #tpu.memory_space<vmem>>, %arg6: memref<32x1xf32, #tpu.memory_space<vmem>>, %arg7: memref<16x1xf32, #tpu.memory_space<vmem>>, %arg8: memref<64x16xf32, #tpu.memory_space<vmem>>, %arg9: memref<32x1xf32, #tpu.memory_space<vmem>>, %arg10: memref<32x32xf32, #tpu.memory_space<vmem>>, %arg11: memref<32x32xf32, #tpu.memory_space<vmem>>, %arg12: memref<32x1xf32, #tpu.memory_space<vmem>>, %arg13: memref<32x1xf32, #tpu.memory_space<vmem>>, %arg14: memref<1x1xf32, #tpu.memory_space<vmem>>, %arg15: memref<1x128xf32, #tpu.memory_space<vmem>>) attributes {dimension_semantics = [#tpu.dimension_semantics<parallel>], iteration_bounds = array<i64: 1>, scalar_prefetch = 0 : i64, scratch_operands = 0 : i64, tpu.core_type = #tpu.core_type<tc>, window_params = [{transform_indices = @transform_0, window_bounds = array<i64: 1, 1024>}, {pipeline_mode = #tpu.pipeline_mode<synchronous>, transform_indices = @transform_1, window_bounds = array<i64: 32, 50>}, {pipeline_mode = #tpu.pipeline_mode<synchronous>, transform_indices = @transform_2, window_bounds = array<i64: 48, 32>}, {pipeline_mode = #tpu.pipeline_mode<synchronous>, transform_indices = @transform_3, window_bounds = array<i64: 16, 1>}, {pipeline_mode = #tpu.pipeline_mode<synchronous>, transform_indices = @transform_4, window_bounds = array<i64: 32, 16>}, {pipeline_mode = #tpu.pipeline_mode<synchronous>, transform_indices = @transform_5, window_bounds = array<i64: 32, 1>}, {pipeline_mode = #tpu.pipeline_mode<synchronous>, transform_indices = @transform_6, window_bounds = array<i64: 16, 1>}, {pipeline_mode = #tpu.pipeline_mode<synchronous>, transform_indices = @transform_7, window_bounds = array<i64: 64, 16>}, {pipeline_mode = #tpu.pipeline_mode<synchronous>, transform_indices = @transform_8, window_bounds = array<i64: 32, 1>}, {pipeline_mode = #tpu.pipeline_mode<synchronous>, transform_indices = @transform_9, window_bounds = array<i64: 32, 32>}, {pipeline_mode = #tpu.pipeline_mode<synchronous>, transform_indices = @transform_10, window_bounds = array<i64: 32, 32>}, {pipeline_mode = #tpu.pipeline_mode<synchronous>, transform_indices = @transform_11, window_bounds = array<i64: 32, 1>}, {pipeline_mode = #tpu.pipeline_mode<synchronous>, transform_indices = @transform_12, window_bounds = array<i64: 32, 1>}, {pipeline_mode = #tpu.pipeline_mode<synchronous>, transform_indices = @transform_13, window_bounds = array<i64: 1, 1>}, {transform_indices = @transform_14, window_bounds = array<i64: 1, 128>}]} {
    %c0 = arith.constant 0 : index
    %c0_0 = arith.constant 0 : index
    %0 = vector.load %arg1[%c0, %c0_0] : memref<1x1024xi32, #tpu.memory_space<vmem>>, vector<1x1024xi32>
    %1 = tpu.iota {dimensions = array<i32: 0>} : vector<50x1024xi32>
    %2 = vector.broadcast %0 : vector<1x1024xi32> to vector<50x1024xi32>
    %3 = arith.cmpi eq, %1, %2 : vector<50x1024xi32>
    %4 = arith.extui %3 : vector<50x1024xi1> to vector<50x1024xi32>
    %5 = arith.sitofp %4 : vector<50x1024xi32> to vector<50x1024xf32>
    %c0_1 = arith.constant 0 : index
    %c0_2 = arith.constant 0 : index
    %6 = vector.load %arg2[%c0_1, %c0_2] : memref<32x50xf32, #tpu.memory_space<vmem>>, vector<32x50xf32>
    %cst = arith.constant dense<0.000000e+00> : vector<32x1024xf32>
    %7 = tpu.matmul %6, %5, %cst {dimension_numbers = #tpu.dot_dimension_numbers<[1], [0], [0], [1], [0, 0, 1, 1], [], []>} : vector<32x50xf32>, vector<50x1024xf32>, vector<32x1024xf32> -> vector<32x1024xf32>
    %c0_3 = arith.constant 0 : index
    %c0_4 = arith.constant 0 : index
    %8 = vector.load %arg3[%c0_3, %c0_4] : memref<48x32xf32, #tpu.memory_space<vmem>>, vector<48x32xf32>
    %cst_5 = arith.constant dense<0.000000e+00> : vector<48x1024xf32>
    %9 = tpu.matmul %8, %7, %cst_5 {dimension_numbers = #tpu.dot_dimension_numbers<[1], [0], [0], [1], [0, 0, 1, 1], [], []>} : vector<48x32xf32>, vector<32x1024xf32>, vector<48x1024xf32> -> vector<48x1024xf32>
    %10 = vector.extract_strided_slice %9 {offsets = [0, 0], sizes = [16, 1024], strides = [1, 1]} : vector<48x1024xf32> to vector<16x1024xf32>
    %c0_6 = arith.constant 0 : index
    %c0_7 = arith.constant 0 : index
    %11 = vector.load %arg4[%c0_6, %c0_7] : memref<16x1xf32, #tpu.memory_space<vmem>>, vector<16x1xf32>
    %12 = vector.broadcast %11 : vector<16x1xf32> to vector<16x1024xf32>
    %13 = arith.addf %10, %12 : vector<16x1024xf32>
    %cst_8 = arith.constant 0.000000e+00 : f32
    %14 = vector.broadcast %cst_8 : f32 to vector<16x1024xf32>
    %15 = arith.maximumf %13, %14 : vector<16x1024xf32>
    %c0_9 = arith.constant 0 : index
    %c0_10 = arith.constant 0 : index
    %16 = vector.load %arg5[%c0_9, %c0_10] : memref<32x16xf32, #tpu.memory_space<vmem>>, vector<32x16xf32>
    %cst_11 = arith.constant dense<0.000000e+00> : vector<32x1024xf32>
    %17 = tpu.matmul %16, %15, %cst_11 {dimension_numbers = #tpu.dot_dimension_numbers<[1], [0], [0], [1], [0, 0, 1, 1], [], []>} : vector<32x16xf32>, vector<16x1024xf32>, vector<32x1024xf32> -> vector<32x1024xf32>
    %c0_12 = arith.constant 0 : index
    %c0_13 = arith.constant 0 : index
    %18 = vector.load %arg6[%c0_12, %c0_13] : memref<32x1xf32, #tpu.memory_space<vmem>>, vector<32x1xf32>
    %19 = vector.broadcast %18 : vector<32x1xf32> to vector<32x1024xf32>
    %20 = arith.addf %17, %19 : vector<32x1024xf32>
    %cst_14 = arith.constant 0.000000e+00 : f32
    %21 = vector.broadcast %cst_14 : f32 to vector<32x1024xf32>
    %22 = arith.maximumf %20, %21 : vector<32x1024xf32>
    %23 = vector.extract_strided_slice %22 {offsets = [0, 0], sizes = [32, 128], strides = [1, 1]} : vector<32x1024xf32> to vector<32x128xf32>
    %24 = vector.extract_strided_slice %22 {offsets = [0, 128], sizes = [32, 128], strides = [1, 1]} : vector<32x1024xf32> to vector<32x128xf32>
    %25 = vector.extract_strided_slice %22 {offsets = [0, 256], sizes = [32, 128], strides = [1, 1]} : vector<32x1024xf32> to vector<32x128xf32>
    %26 = vector.extract_strided_slice %22 {offsets = [0, 384], sizes = [32, 128], strides = [1, 1]} : vector<32x1024xf32> to vector<32x128xf32>
    %27 = vector.extract_strided_slice %22 {offsets = [0, 512], sizes = [32, 128], strides = [1, 1]} : vector<32x1024xf32> to vector<32x128xf32>
    %28 = vector.extract_strided_slice %22 {offsets = [0, 640], sizes = [32, 128], strides = [1, 1]} : vector<32x1024xf32> to vector<32x128xf32>
    %29 = vector.extract_strided_slice %22 {offsets = [0, 768], sizes = [32, 128], strides = [1, 1]} : vector<32x1024xf32> to vector<32x128xf32>
    %30 = vector.extract_strided_slice %22 {offsets = [0, 896], sizes = [32, 128], strides = [1, 1]} : vector<32x1024xf32> to vector<32x128xf32>
    %31 = arith.maximumf %23, %24 : vector<32x128xf32>
    %32 = arith.maximumf %25, %26 : vector<32x128xf32>
    %33 = arith.maximumf %27, %28 : vector<32x128xf32>
    %34 = arith.maximumf %29, %30 : vector<32x128xf32>
    %35 = arith.maximumf %31, %32 : vector<32x128xf32>
    %36 = arith.maximumf %33, %34 : vector<32x128xf32>
    %37 = arith.maximumf %35, %36 : vector<32x128xf32>
    %38 = vector.extract_strided_slice %9 {offsets = [16, 0], sizes = [16, 896], strides = [1, 1]} : vector<48x1024xf32> to vector<16x896xf32>
    %39 = vector.extract_strided_slice %9 {offsets = [32, 128], sizes = [16, 896], strides = [1, 1]} : vector<48x1024xf32> to vector<16x896xf32>
    %40 = arith.addf %38, %39 : vector<16x896xf32>
    %c0_15 = arith.constant 0 : index
    %c0_16 = arith.constant 0 : index
    %41 = vector.load %arg7[%c0_15, %c0_16] : memref<16x1xf32, #tpu.memory_space<vmem>>, vector<16x1xf32>
    %42 = vector.broadcast %41 : vector<16x1xf32> to vector<16x896xf32>
    %43 = arith.addf %40, %42 : vector<16x896xf32>
    %cst_17 = arith.constant 0.000000e+00 : f32
    %44 = vector.broadcast %cst_17 : f32 to vector<16x896xf32>
    %45 = arith.maximumf %43, %44 : vector<16x896xf32>
    %c0_18 = arith.constant 0 : index
    %c0_19 = arith.constant 0 : index
    %46 = vector.load %arg8[%c0_18, %c0_19] : memref<64x16xf32, #tpu.memory_space<vmem>>, vector<64x16xf32>
    %cst_20 = arith.constant dense<0.000000e+00> : vector<64x896xf32>
    %47 = tpu.matmul %46, %45, %cst_20 {dimension_numbers = #tpu.dot_dimension_numbers<[1], [0], [0], [1], [0, 0, 1, 1], [], []>} : vector<64x16xf32>, vector<16x896xf32>, vector<64x896xf32> -> vector<64x896xf32>
    %48 = vector.extract_strided_slice %47 {offsets = [0, 0], sizes = [32, 768], strides = [1, 1]} : vector<64x896xf32> to vector<32x768xf32>
    %49 = vector.extract_strided_slice %47 {offsets = [32, 128], sizes = [32, 768], strides = [1, 1]} : vector<64x896xf32> to vector<32x768xf32>
    %50 = arith.addf %48, %49 : vector<32x768xf32>
    %c0_21 = arith.constant 0 : index
    %c0_22 = arith.constant 0 : index
    %51 = vector.load %arg9[%c0_21, %c0_22] : memref<32x1xf32, #tpu.memory_space<vmem>>, vector<32x1xf32>
    %52 = vector.broadcast %51 : vector<32x1xf32> to vector<32x768xf32>
    %53 = arith.addf %50, %52 : vector<32x768xf32>
    %cst_23 = arith.constant 0.000000e+00 : f32
    %54 = vector.broadcast %cst_23 : f32 to vector<32x768xf32>
    %55 = arith.maximumf %53, %54 : vector<32x768xf32>
    %56 = vector.extract_strided_slice %55 {offsets = [0, 0], sizes = [32, 128], strides = [1, 1]} : vector<32x768xf32> to vector<32x128xf32>
    %57 = vector.extract_strided_slice %55 {offsets = [0, 128], sizes = [32, 128], strides = [1, 1]} : vector<32x768xf32> to vector<32x128xf32>
    %58 = vector.extract_strided_slice %55 {offsets = [0, 256], sizes = [32, 128], strides = [1, 1]} : vector<32x768xf32> to vector<32x128xf32>
    %59 = vector.extract_strided_slice %55 {offsets = [0, 384], sizes = [32, 128], strides = [1, 1]} : vector<32x768xf32> to vector<32x128xf32>
    %60 = vector.extract_strided_slice %55 {offsets = [0, 512], sizes = [32, 128], strides = [1, 1]} : vector<32x768xf32> to vector<32x128xf32>
    %61 = vector.extract_strided_slice %55 {offsets = [0, 640], sizes = [32, 128], strides = [1, 1]} : vector<32x768xf32> to vector<32x128xf32>
    %62 = arith.maximumf %56, %57 : vector<32x128xf32>
    %63 = arith.maximumf %58, %59 : vector<32x128xf32>
    %64 = arith.maximumf %60, %61 : vector<32x128xf32>
    %65 = arith.maximumf %62, %63 : vector<32x128xf32>
    %66 = arith.maximumf %65, %64 : vector<32x128xf32>
    %c0_24 = arith.constant 0 : index
    %c0_25 = arith.constant 0 : index
    %67 = vector.load %arg10[%c0_24, %c0_25] : memref<32x32xf32, #tpu.memory_space<vmem>>, vector<32x32xf32>
    %cst_26 = arith.constant dense<0.000000e+00> : vector<32x128xf32>
    %68 = tpu.matmul %67, %37, %cst_26 {dimension_numbers = #tpu.dot_dimension_numbers<[1], [0], [0], [1], [0, 0, 1, 1], [], []>} : vector<32x32xf32>, vector<32x128xf32>, vector<32x128xf32> -> vector<32x128xf32>
    %c0_27 = arith.constant 0 : index
    %c0_28 = arith.constant 0 : index
    %69 = vector.load %arg11[%c0_27, %c0_28] : memref<32x32xf32, #tpu.memory_space<vmem>>, vector<32x32xf32>
    %cst_29 = arith.constant dense<0.000000e+00> : vector<32x128xf32>
    %70 = tpu.matmul %69, %66, %cst_29 {dimension_numbers = #tpu.dot_dimension_numbers<[1], [0], [0], [1], [0, 0, 1, 1], [], []>} : vector<32x32xf32>, vector<32x128xf32>, vector<32x128xf32> -> vector<32x128xf32>
    %71 = arith.addf %68, %70 : vector<32x128xf32>
    %c0_30 = arith.constant 0 : index
    %c0_31 = arith.constant 0 : index
    %72 = vector.load %arg12[%c0_30, %c0_31] : memref<32x1xf32, #tpu.memory_space<vmem>>, vector<32x1xf32>
    %73 = vector.broadcast %72 : vector<32x1xf32> to vector<32x128xf32>
    %74 = arith.addf %71, %73 : vector<32x128xf32>
    %cst_32 = arith.constant 0.000000e+00 : f32
    %75 = vector.broadcast %cst_32 : f32 to vector<32x128xf32>
    %76 = arith.maximumf %74, %75 : vector<32x128xf32>
    %c0_33 = arith.constant 0 : index
    %c0_34 = arith.constant 0 : index
    %77 = vector.load %arg13[%c0_33, %c0_34] : memref<32x1xf32, #tpu.memory_space<vmem>>, vector<32x1xf32>
    %78 = vector.broadcast %77 : vector<32x1xf32> to vector<32x128xf32>
    %79 = arith.mulf %76, %78 : vector<32x128xf32>
    %cst_35 = arith.constant dense<0.000000e+00> : vector<128xf32>
    %80 = vector.multi_reduction <add>, %79, %cst_35 [0] : vector<32x128xf32> to vector<128xf32>
    %81 = vector.shape_cast %80 : vector<128xf32> to vector<1x128xf32>
    %c0_36 = arith.constant 0 : index
    %c0_37 = arith.constant 0 : index
    %82 = vector.load %arg14[%c0_36, %c0_37] : memref<1x1xf32, #tpu.memory_space<vmem>>, vector<1x1xf32>
    %83 = vector.broadcast %82 : vector<1x1xf32> to vector<1x128xf32>
    %84 = arith.addf %81, %83 : vector<1x128xf32>
    %85 = arith.negf %84 : vector<1x128xf32>
    %86 = math.exp %85 : vector<1x128xf32>
    %cst_38 = arith.constant 1.000000e+00 : f32
    %87 = vector.broadcast %cst_38 : f32 to vector<1x128xf32>
    %88 = arith.addf %87, %86 : vector<1x128xf32>
    %89 = arith.divf %87, %88 : vector<1x128xf32>
    %c0_39 = arith.constant 0 : index
    %c0_40 = arith.constant 0 : index
    %90 = vector.load %arg15[%c0_39, %c0_40] : memref<1x128xf32, #tpu.memory_space<vmem>>, vector<1x128xf32>
    tpu.vector_store %arg15[%c0_39, %c0_40], %89 {strides = array<i32>} : memref<1x128xf32, #tpu.memory_space<vmem>>, vector<1x128xf32>,
    return
  }
  func.func @transform_0(%arg0: i32) -> (i32, i32) {
    %c0_i32 = arith.constant 0 : i32
    %c0_i32_0 = arith.constant 0 : i32
    return %c0_i32, %arg0 : i32, i32
  }
  func.func @transform_1(%arg0: i32) -> (i32, i32) {
    %c0_i32 = arith.constant 0 : i32
    %c0_i32_0 = arith.constant 0 : i32
    %c0_i32_1 = arith.constant 0 : i32
    return %c0_i32, %c0_i32_0 : i32, i32
  }
  func.func @transform_2(%arg0: i32) -> (i32, i32) {
    %c0_i32 = arith.constant 0 : i32
    %c0_i32_0 = arith.constant 0 : i32
    %c0_i32_1 = arith.constant 0 : i32
    return %c0_i32, %c0_i32_0 : i32, i32
  }
  func.func @transform_3(%arg0: i32) -> (i32, i32) {
    %c0_i32 = arith.constant 0 : i32
    %c0_i32_0 = arith.constant 0 : i32
    %c0_i32_1 = arith.constant 0 : i32
    return %c0_i32, %c0_i32_0 : i32, i32
  }
  func.func @transform_4(%arg0: i32) -> (i32, i32) {
    %c0_i32 = arith.constant 0 : i32
    %c0_i32_0 = arith.constant 0 : i32
    %c0_i32_1 = arith.constant 0 : i32
    return %c0_i32, %c0_i32_0 : i32, i32
  }
  func.func @transform_5(%arg0: i32) -> (i32, i32) {
    %c0_i32 = arith.constant 0 : i32
    %c0_i32_0 = arith.constant 0 : i32
    %c0_i32_1 = arith.constant 0 : i32
    return %c0_i32, %c0_i32_0 : i32, i32
  }
  func.func @transform_6(%arg0: i32) -> (i32, i32) {
    %c0_i32 = arith.constant 0 : i32
    %c0_i32_0 = arith.constant 0 : i32
    %c0_i32_1 = arith.constant 0 : i32
    return %c0_i32, %c0_i32_0 : i32, i32
  }
  func.func @transform_7(%arg0: i32) -> (i32, i32) {
    %c0_i32 = arith.constant 0 : i32
    %c0_i32_0 = arith.constant 0 : i32
    %c0_i32_1 = arith.constant 0 : i32
    return %c0_i32, %c0_i32_0 : i32, i32
  }
  func.func @transform_8(%arg0: i32) -> (i32, i32) {
    %c0_i32 = arith.constant 0 : i32
    %c0_i32_0 = arith.constant 0 : i32
    %c0_i32_1 = arith.constant 0 : i32
    return %c0_i32, %c0_i32_0 : i32, i32
  }
  func.func @transform_9(%arg0: i32) -> (i32, i32) {
    %c0_i32 = arith.constant 0 : i32
    %c0_i32_0 = arith.constant 0 : i32
    %c0_i32_1 = arith.constant 0 : i32
    return %c0_i32, %c0_i32_0 : i32, i32
  }
  func.func @transform_10(%arg0: i32) -> (i32, i32) {
    %c0_i32 = arith.constant 0 : i32
    %c0_i32_0 = arith.constant 0 : i32
    %c0_i32_1 = arith.constant 0 : i32
    return %c0_i32, %c0_i32_0 : i32, i32
  }
  func.func @transform_11(%arg0: i32) -> (i32, i32) {
    %c0_i32 = arith.constant 0 : i32
    %c0_i32_0 = arith.constant 0 : i32
    %c0_i32_1 = arith.constant 0 : i32
    return %c0_i32, %c0_i32_0 : i32, i32
  }
  func.func @transform_12(%arg0: i32) -> (i32, i32) {
    %c0_i32 = arith.constant 0 : i32
    %c0_i32_0 = arith.constant 0 : i32
    %c0_i32_1 = arith.constant 0 : i32
    return %c0_i32, %c0_i32_0 : i32, i32
  }
  func.func @transform_13(%arg0: i32) -> (i32, i32) {
    %c0_i32 = arith.constant 0 : i32
    %c0_i32_0 = arith.constant 0 : i32
    %c0_i32_1 = arith.constant 0 : i32
    return %c0_i32, %c0_i32_0 : i32, i32
  }
  func.func @transform_14(%arg0: i32) -> (i32, i32) {
    %c0_i32 = arith.constant 0 : i32
    %c0_i32_0 = arith.constant 0 : i32
    return %c0_i32, %arg0 : i32, i32
  }
}

</mosaic_0001>

<llo_original>
// kernel: multi_cnn_text_forward.1
$region0: #{multi_cnn_text_forward.1}
  #allocation0 [shape = 'u32[]', space=smem, size = 0x4, offset = 0x4, fixed_abs, tag = 'smem constant byte address 0x4 - core index']
  #allocation1 [shape = 'u32[144,128]{1,0:T(1,128)}', space=vmem, size = 0x12000, scoped, tag = 'internal scratch']
  #allocation2 [shape = 'f32[1,1]{1,0:T(1,128)S(1)}', space=vmem, size = 0x200, scoped, tag = 'scoped memory for multi_cnn_text_forward.1']
  %s0 = inlined_call_operand.vmem [shape: s32[1,1024], index: 0, kind: input, shape index: {}]
  %s1 = inlined_call_operand.vmem [shape: f32[32,50], index: 1, kind: input, shape index: {}]
  %s2 = inlined_call_operand.vmem [shape: f32[48,32], index: 2, kind: input, shape index: {}]
  %s3 = inlined_call_operand.vmem [shape: f32[16,1], index: 3, kind: input, shape index: {}]
  %s4 = inlined_call_operand.vmem [shape: f32[32,16], index: 4, kind: input, shape index: {}]
  %s5 = inlined_call_operand.vmem [shape: f32[32,1], index: 5, kind: input, shape index: {}]
  %s6 = inlined_call_operand.vmem [shape: f32[16,1], index: 6, kind: input, shape index: {}]
  %s7 = inlined_call_operand.vmem [shape: f32[64,16], index: 7, kind: input, shape index: {}]
  %s8 = inlined_call_operand.vmem [shape: f32[32,1], index: 8, kind: input, shape index: {}]
  %s9 = inlined_call_operand.vmem [shape: f32[32,32], index: 9, kind: input, shape index: {}]
  %s10 = inlined_call_operand.vmem [shape: f32[32,32], index: 10, kind: input, shape index: {}]
  %s11 = inlined_call_operand.vmem [shape: f32[32,1], index: 11, kind: input, shape index: {}]
  %s12 = inlined_call_operand.vmem [shape: f32[32,1], index: 12, kind: input, shape index: {}]
  %s13 = inlined_call_operand.<no memory space> [shape: f32[1,1], index: 13, kind: input, shape index: {}]
  %s14 = inlined_call_operand.vmem [shape: f32[1,128], index: 14, kind: output, shape index: {}]
  %s15 = sld [smem:[#allocation0]]
  $region66: #{multi_cnn_text_forward.1} parent=0
    _
  %s17 = ssub.s32 1, %s15
  %s18 = scalar_select 0, %s17, %s15
  %v19 = vstv %s13
  %20 = vst [vmem:[#allocation2] sm:$0x1] %v19
  // Predicated region
  $region2: #{multi_cnn_text_forward.1} parent=0 // pred_check
    _
  $region3: #{multi_cnn_text_forward.1} parent=0 // pred_check_branch
    %22 = sbr.rel (0) target = $region5
  $region4: #{multi_cnn_text_forward.1} parent=0 // pred_region
    _
  $region5: #{multi_cnn_text_forward.1} parent=0 // pred_fallthru
    _
  // Predicated region
  $region6: #{multi_cnn_text_forward.1} parent=0 // pred_check
    _
  $region7: #{multi_cnn_text_forward.1} parent=0 // pred_check_branch
    %24 = sbr.rel (0) target = $region9
  $region8: #{multi_cnn_text_forward.1} parent=0 // pred_region
    _
  $region9: #{multi_cnn_text_forward.1} parent=0 // pred_fallthru
    _
  // Predicated region
  $region10: #{multi_cnn_text_forward.1} parent=0 // pred_check
    _
  $region11: #{multi_cnn_text_forward.1} parent=0 // pred_check_branch
    %26 = sbr.rel (0) target = $region13
  $region12: #{multi_cnn_text_forward.1} parent=0 // pred_region
    _
  $region13: #{multi_cnn_text_forward.1} parent=0 // pred_fallthru
    _
  // Predicated region
  $region14: #{multi_cnn_text_forward.1} parent=0 // pred_check
    _
  $region15: #{multi_cnn_text_forward.1} parent=0 // pred_check_branch
    %28 = sbr.rel (0) target = $region17
  $region16: #{multi_cnn_text_forward.1} parent=0 // pred_region
    _
  $region17: #{multi_cnn_text_forward.1} parent=0 // pred_fallthru
    _
  // Predicated region
  $region18: #{multi_cnn_text_forward.1} parent=0 // pred_check
    _
  $region19: #{multi_cnn_text_forward.1} parent=0 // pred_check_branch
    %30 = sbr.rel (0) target = $region21
  $region20: #{multi_cnn_text_forward.1} parent=0 // pred_region
    _
  $region21: #{multi_cnn_text_forward.1} parent=0 // pred_fallthru
    _
  // Predicated region
  $region22: #{multi_cnn_text_forward.1} parent=0 // pred_check
    _
  $region23: #{multi_cnn_text_forward.1} parent=0 // pred_check_branch
    %32 = sbr.rel (0) target = $region25
  $region24: #{multi_cnn_text_forward.1} parent=0 // pred_region
    _
  $region25: #{multi_cnn_text_forward.1} parent=0 // pred_fallthru
    _
  // Predicated region
  $region26: #{multi_cnn_text_forward.1} parent=0 // pred_check
    _
  $region27: #{multi_cnn_text_forward.1} parent=0 // pred_check_branch
    %34 = sbr.rel (0) target = $region29
  $region28: #{multi_cnn_text_forward.1} parent=0 // pred_region
    _
  $region29: #{multi_cnn_text_forward.1} parent=0 // pred_fallthru
    _
  // Predicated region
  $region30: #{multi_cnn_text_forward.1} parent=0 // pred_check
    _
  $region31: #{multi_cnn_text_forward.1} parent=0 // pred_check_branch
    %36 = sbr.rel (0) target = $region33
  $region32: #{multi_cnn_text_forward.1} parent=0 // pred_region
    _
  $region33: #{multi_cnn_text_forward.1} parent=0 // pred_fallthru
    _
  // Predicated region
  $region34: #{multi_cnn_text_forward.1} parent=0 // pred_check
    _
  $region35: #{multi_cnn_text_forward.1} parent=0 // pred_check_branch
    %38 = sbr.rel (0) target = $region37
  $region36: #{multi_cnn_text_forward.1} parent=0 // pred_region
    _
  $region37: #{multi_cnn_text_forward.1} parent=0 // pred_fallthru
    _
  // Predicated region
  $region38: #{multi_cnn_text_forward.1} parent=0 // pred_check
    _
  $region39: #{multi_cnn_text_forward.1} parent=0 // pred_check_branch
    %40 = sbr.rel (0) target = $region41
  $region40: #{multi_cnn_text_forward.1} parent=0 // pred_region
    _
  $region41: #{multi_cnn_text_forward.1} parent=0 // pred_fallthru
    _
  // Predicated region
  $region42: #{multi_cnn_text_forward.1} parent=0 // pred_check
    _
  $region43: #{multi_cnn_text_forward.1} parent=0 // pred_check_branch
    %42 = sbr.rel (0) target = $region45
  $region44: #{multi_cnn_text_forward.1} parent=0 // pred_region
    _
  $region45: #{multi_cnn_text_forward.1} parent=0 // pred_fallthru
    _
  // Predicated region
  $region46: #{multi_cnn_text_forward.1} parent=0 // pred_check
    _
  $region47: #{multi_cnn_text_forward.1} parent=0 // pred_check_branch
    %44 = sbr.rel (0) target = $region49
  $region48: #{multi_cnn_text_forward.1} parent=0 // pred_region
    _
  $region49: #{multi_cnn_text_forward.1} parent=0 // pred_fallthru
    _
  // Predicated region
  $region50: #{multi_cnn_text_forward.1} parent=0 // pred_check
    _
  $region51: #{multi_cnn_text_forward.1} parent=0 // pred_check_branch
    %46 = sbr.rel (0) target = $region53
  $region52: #{multi_cnn_text_forward.1} parent=0 // pred_region
    _
  $region53: #{multi_cnn_text_forward.1} parent=0 // pred_fallthru
    _
  // Predicated region
  $region54: #{multi_cnn_text_forward.1} parent=0 // pred_check
    _
  $region55: #{multi_cnn_text_forward.1} parent=0 // pred_check_branch
    %48 = sbr.rel (0) target = $region57
  $region56: #{multi_cnn_text_forward.1} parent=0 // pred_region
    _
  $region57: #{multi_cnn_text_forward.1} parent=0 // pred_fallthru
    _
  %v49 = vld [vmem:[%s0] sm:$0xff]
  %v50 = vlaneseq
  %v51 = vshrl.u32 %v50, 7
  %v52 = vadd.s32 %v51, 8
  %v53 = vadd.s32 %v51, 16
  %v54 = vadd.s32 %v51, 24
  %v55 = vadd.s32 %v51, 32
  %v56 = vadd.s32 %v51, 40
  %v57 = vadd.s32 %v51, 48
  %v58 = vlaneseq
  %v59 = vshrl.u32 %v58, 7
  %v60 = vsub.s32 0, %v59
  %v61 = vrot.slane %v49, %v60
  %v62 = vlaneseq
  %v63 = vshrl.u32 %v62, 7
  %v64 = vsub.s32 1, %v63
  %v65 = vrot.slane %v49, %v64
  %v66 = vlaneseq
  %v67 = vshrl.u32 %v66, 7
  %v68 = vsub.s32 2, %v67
  %v69 = vrot.slane %v49, %v68
  %v70 = vlaneseq
  %v71 = vshrl.u32 %v70, 7
  %v72 = vsub.s32 3, %v71
  %v73 = vrot.slane %v49, %v72
  %v74 = vlaneseq
  %v75 = vshrl.u32 %v74, 7
  %v76 = vsub.s32 4, %v75
  %v77 = vrot.slane %v49, %v76
  %v78 = vlaneseq
  %v79 = vshrl.u32 %v78, 7
  %v80 = vsub.s32 5, %v79
  %v81 = vrot.slane %v49, %v80
  %v82 = vlaneseq
  %v83 = vshrl.u32 %v82, 7
  %v84 = vsub.s32 6, %v83
  %v85 = vrot.slane %v49, %v84
  %v86 = vlaneseq
  %v87 = vshrl.u32 %v86, 7
  %v88 = vsub.s32 7, %v87
  %v89 = vrot.slane %v49, %v88
  %vm90 = vcmp.eq.s32.totalorder %v51, %v61
  %vm91 = vcmp.eq.s32.totalorder %v51, %v65
  %vm92 = vcmp.eq.s32.totalorder %v51, %v69
  %vm93 = vcmp.eq.s32.totalorder %v51, %v73
  %vm94 = vcmp.eq.s32.totalorder %v51, %v77
  %vm95 = vcmp.eq.s32.totalorder %v51, %v81
  %vm96 = vcmp.eq.s32.totalorder %v51, %v85
  %vm97 = vcmp.eq.s32.totalorder %v51, %v89
  %vm98 = vcmp.eq.s32.totalorder %v52, %v61
  %vm99 = vcmp.eq.s32.totalorder %v52, %v65
  %vm100 = vcmp.eq.s32.totalorder %v52, %v69
  %vm101 = vcmp.eq.s32.totalorder %v52, %v73
  %vm102 = vcmp.eq.s32.totalorder %v52, %v77
  %vm103 = vcmp.eq.s32.totalorder %v52, %v81
  %vm104 = vcmp.eq.s32.totalorder %v52, %v85
  %vm105 = vcmp.eq.s32.totalorder %v52, %v89
  %vm106 = vcmp.eq.s32.totalorder %v53, %v61
  %vm107 = vcmp.eq.s32.totalorder %v53, %v65
  %vm108 = vcmp.eq.s32.totalorder %v53, %v69
  %vm109 = vcmp.eq.s32.totalorder %v53, %v73
  %vm110 = vcmp.eq.s32.totalorder %v53, %v77
  %vm111 = vcmp.eq.s32.totalorder %v53, %v81
  %vm112 = vcmp.eq.s32.totalorder %v53, %v85
  %vm113 = vcmp.eq.s32.totalorder %v53, %v89
  %vm114 = vcmp.eq.s32.totalorder %v54, %v61
  %vm115 = vcmp.eq.s32.totalorder %v54, %v65
  %vm116 = vcmp.eq.s32.totalorder %v54, %v69
  %vm117 = vcmp.eq.s32.totalorder %v54, %v73
  %vm118 = vcmp.eq.s32.totalorder %v54, %v77
  %vm119 = vcmp.eq.s32.totalorder %v54, %v81
  %vm120 = vcmp.eq.s32.totalorder %v54, %v85
  %vm121 = vcmp.eq.s32.totalorder %v54, %v89
  %vm122 = vcmp.eq.s32.totalorder %v55, %v61
  %vm123 = vcmp.eq.s32.totalorder %v55, %v65
  %vm124 = vcmp.eq.s32.totalorder %v55, %v69
  %vm125 = vcmp.eq.s32.totalorder %v55, %v73
  %vm126 = vcmp.eq.s32.totalorder %v55, %v77
  %vm127 = vcmp.eq.s32.totalorder %v55, %v81
  %vm128 = vcmp.eq.s32.totalorder %v55, %v85
  %vm129 = vcmp.eq.s32.totalorder %v55, %v89
  %vm130 = vcmp.eq.s32.totalorder %v56, %v61
  %vm131 = vcmp.eq.s32.totalorder %v56, %v65
  %vm132 = vcmp.eq.s32.totalorder %v56, %v69
  %vm133 = vcmp.eq.s32.totalorder %v56, %v73
  %vm134 = vcmp.eq.s32.totalorder %v56, %v77
  %vm135 = vcmp.eq.s32.totalorder %v56, %v81
  %vm136 = vcmp.eq.s32.totalorder %v56, %v85
  %vm137 = vcmp.eq.s32.totalorder %v56, %v89
  %vm138 = vcmp.eq.s32.totalorder %v57, %v61
  %vm139 = vcmp.eq.s32.totalorder %v57, %v65
  %vm140 = vcmp.eq.s32.totalorder %v57, %v69
  %vm141 = vcmp.eq.s32.totalorder %v57, %v73
  %vm142 = vcmp.eq.s32.totalorder %v57, %v77
  %vm143 = vcmp.eq.s32.totalorder %v57, %v81
  %vm144 = vcmp.eq.s32.totalorder %v57, %v85
  %vm145 = vcmp.eq.s32.totalorder %v57, %v89
  %v146 = vsel %vm90, 1, 0
  %v147 = vsel %vm91, 1, 0
  %v148 = vsel %vm92, 1, 0
  %v149 = vsel %vm93, 1, 0
  %v150 = vsel %vm94, 1, 0
  %v151 = vsel %vm95, 1, 0
  %v152 = vsel %vm96, 1, 0
  %v153 = vsel %vm97, 1, 0
  %v154 = vsel %vm98, 1, 0
  %v155 = vsel %vm99, 1, 0
  %v156 = vsel %vm100, 1, 0
  %v157 = vsel %vm101, 1, 0
  %v158 = vsel %vm102, 1, 0
  %v159 = vsel %vm103, 1, 0
  %v160 = vsel %vm104, 1, 0
  %v161 = vsel %vm105, 1, 0
  %v162 = vsel %vm106, 1, 0
  %v163 = vsel %vm107, 1, 0
  %v164 = vsel %vm108, 1, 0
  %v165 = vsel %vm109, 1, 0
  %v166 = vsel %vm110, 1, 0
  %v167 = vsel %vm111, 1, 0
  %v168 = vsel %vm112, 1, 0
  %v169 = vsel %vm113, 1, 0
  %v170 = vsel %vm114, 1, 0
  %v171 = vsel %vm115, 1, 0
  %v172 = vsel %vm116, 1, 0
  %v173 = vsel %vm117, 1, 0
  %v174 = vsel %vm118, 1, 0
  %v175 = vsel %vm119, 1, 0
  %v176 = vsel %vm120, 1, 0
  %v177 = vsel %vm121, 1, 0
  %v178 = vsel %vm122, 1, 0
  %v179 = vsel %vm123, 1, 0
  %v180 = vsel %vm124, 1, 0
  %v181 = vsel %vm125, 1, 0
  %v182 = vsel %vm126, 1, 0
  %v183 = vsel %vm127, 1, 0
  %v184 = vsel %vm128, 1, 0
  %v185 = vsel %vm129, 1, 0
  %v186 = vsel %vm130, 1, 0
  %v187 = vsel %vm131, 1, 0
  %v188 = vsel %vm132, 1, 0
  %v189 = vsel %vm133, 1, 0
  %v190 = vsel %vm134, 1, 0
  %v191 = vsel %vm135, 1, 0
  %v192 = vsel %vm136, 1, 0
  %v193 = vsel %vm137, 1, 0
  %v194 = vsel %vm138, 1, 0
  %v195 = vsel %vm139, 1, 0
  %v196 = vsel %vm140, 1, 0
  %v197 = vsel %vm141, 1, 0
  %v198 = vsel %vm142, 1, 0
  %v199 = vsel %vm143, 1, 0
  %v200 = vsel %vm144, 1, 0
  %v201 = vsel %vm145, 1, 0
  %v202 = vcvt.s32.f32 %v146
  %v203 = vcvt.s32.f32 %v147
  %v204 = vcvt.s32.f32 %v148
  %v205 = vcvt.s32.f32 %v149
  %v206 = vcvt.s32.f32 %v150
  %v207 = vcvt.s32.f32 %v151
  %v208 = vcvt.s32.f32 %v152
  %v209 = vcvt.s32.f32 %v153
  %v210 = vcvt.s32.f32 %v154
  %v211 = vcvt.s32.f32 %v155
  %v212 = vcvt.s32.f32 %v156
  %v213 = vcvt.s32.f32 %v157
  %v214 = vcvt.s32.f32 %v158
  %v215 = vcvt.s32.f32 %v159
  %v216 = vcvt.s32.f32 %v160
  %v217 = vcvt.s32.f32 %v161
  %v218 = vcvt.s32.f32 %v162
  %v219 = vcvt.s32.f32 %v163
  %v220 = vcvt.s32.f32 %v164
  %v221 = vcvt.s32.f32 %v165
  %v222 = vcvt.s32.f32 %v166
  %v223 = vcvt.s32.f32 %v167
  %v224 = vcvt.s32.f32 %v168
  %v225 = vcvt.s32.f32 %v169
  %v226 = vcvt.s32.f32 %v170
  %v227 = vcvt.s32.f32 %v171
  %v228 = vcvt.s32.f32 %v172
  %v229 = vcvt.s32.f32 %v173
  %v230 = vcvt.s32.f32 %v174
  %v231 = vcvt.s32.f32 %v175
  %v232 = vcvt.s32.f32 %v176
  %v233 = vcvt.s32.f32 %v177
  %v234 = vcvt.s32.f32 %v178
  %v235 = vcvt.s32.f32 %v179
  %v236 = vcvt.s32.f32 %v180
  %v237 = vcvt.s32.f32 %v181
  %v238 = vcvt.s32.f32 %v182
  %v239 = vcvt.s32.f32 %v183
  %v240 = vcvt.s32.f32 %v184
  %v241 = vcvt.s32.f32 %v185
  %v242 = vcvt.s32.f32 %v186
  %v243 = vcvt.s32.f32 %v187
  %v244 = vcvt.s32.f32 %v188
  %v245 = vcvt.s32.f32 %v189
  %v246 = vcvt.s32.f32 %v190
  %v247 = vcvt.s32.f32 %v191
  %v248 = vcvt.s32.f32 %v192
  %v249 = vcvt.s32.f32 %v193
  %v250 = vcvt.s32.f32 %v194
  %v251 = vcvt.s32.f32 %v195
  %v252 = vcvt.s32.f32 %v196
  %v253 = vcvt.s32.f32 %v197
  %v254 = vcvt.s32.f32 %v198
  %v255 = vcvt.s32.f32 %v199
  %v256 = vcvt.s32.f32 %v200
  %v257 = vcvt.s32.f32 %v201
  %v258 = vld [vmem:[%s1] sm:$0xff]
  %v259 = vld [vmem:[%s1 + $0x8] sm:$0xff]
  %v260 = vld [vmem:[%s1 + $0x10] sm:$0xff]
  %v261 = vld [vmem:[%s1 + $0x18] sm:$0xff]
  %vm262 = vcmask 408576
  %v264 = vsel %vm262, %v258, 0
  %v267 = vsel %vm262, %v259, 0
  %v270 = vsel %vm262, %v260, 0
  %v273 = vsel %vm262, %v261, 0
  %vm275 = vcmask 1041408
  %v277 = vsel %vm275, %v250, 0
  %v280 = vsel %vm275, %v251, 0
  %v283 = vsel %vm275, %v252, 0
  %v286 = vsel %vm275, %v253, 0
  %v289 = vsel %vm275, %v254, 0
  %v292 = vsel %vm275, %v255, 0
  %v295 = vsel %vm275, %v256, 0
  %v298 = vsel %vm275, %v257, 0
  %300 = vmatprep.subr.mxu0 0.0
  %301 = vmatpush1.msra.mxu0 0.0
  %302 = vmatprep.subr.mxu0 0.0
  %303 = vmatpush1.msra.mxu0 0.0
  %304 = vmatprep.subr.mxu0 0.0
  %305 = vmatpush1.msra.mxu0 0.0
  %306 = vmatprep.subr.mxu0 0.0
  %307 = vmatpush1.msra.mxu0 0.0
  %308 = vmatprep.subr.mxu0 0.0
  %309 = vmatpush1.msra.mxu0 0.0
  %310 = vmatprep.subr.mxu0 0.0
  %311 = vmatpush1.msra.mxu0 0.0
  %312 = vmatprep.subr.mxu0 0.0
  %313 = vmatpush1.msra.mxu0 0.0
  %314 = vmatprep.subr.mxu0 0.0
  %315 = vmatpush1.msra.mxu0 0.0
  %316 = vmatprep.subr.mxu0 0.0
  %317 = vmatpush1.msra.mxu0 0.0
  %318 = vmatprep.subr.mxu0 %v280
  %319 = vmatpush1.msra.mxu0 %v277
  %320 = vmatprep.subr.mxu0 %v243
  %321 = vmatpush1.msra.mxu0 %v242
  %322 = vmatprep.subr.mxu0 %v235
  %323 = vmatpush1.msra.mxu0 %v234
  %324 = vmatprep.subr.mxu0 %v227
  %325 = vmatpush1.msra.mxu0 %v226
  %326 = vmatprep.subr.mxu0 %v219
  %327 = vmatpush1.msra.mxu0 %v218
  %328 = vmatprep.subr.mxu0 %v211
  %329 = vmatpush1.msra.mxu0 %v210
  %330 = vmatprep.subr.mxu0 %v203
  %331 = vmatpush1.msra.mxu0 %v202
  %332 = vmatprep.subr.mxu0 0.0
  %333 = vmatpush2.msra.mxu0 0.0
  %334 = vmatprep.subr.mxu0 0.0
  %335 = vmatpush2.msra.mxu0 0.0
  %336 = vmatprep.subr.mxu0 0.0
  %337 = vmatpush2.msra.mxu0 0.0
  %338 = vmatprep.subr.mxu0 0.0
  %339 = vmatpush2.msra.mxu0 0.0
  %340 = vmatprep.subr.mxu0 0.0
  %341 = vmatpush2.msra.mxu0 0.0
  %342 = vmatprep.subr.mxu0 0.0
  %343 = vmatpush2.msra.mxu0 0.0
  %344 = vmatprep.subr.mxu0 0.0
  %345 = vmatpush2.msra.mxu0 0.0
  %346 = vmatprep.subr.mxu0 0.0
  %347 = vmatpush2.msra.mxu0 0.0
  %348 = vmatprep.subr.mxu0 0.0
  %349 = vmatpush2.msra.mxu0 0.0
  %350 = vmatprep.subr.mxu0 0.0
  %351 = vmatpush2.msra.mxu0 0.0
  %352 = vmatprep.subr.mxu0 0.0
  %353 = vmatpush2.msra.mxu0 0.0
  %354 = vmatprep.subr.mxu0 0.0
  %355 = vmatpush2.msra.mxu0 0.0
  %356 = vmatprep.subr.mxu0 0.0
  %357 = vmatpush2.msra.mxu0 0.0
  %358 = vmatprep.subr.mxu0 0.0
  %359 = vmatpush2.msra.mxu0 0.0
  %360 = vmatprep.subr.mxu0 0.0
  %361 = vmatpush2.msra.mxu0 0.0
  %362 = vmatprep.subr.mxu0 0.0
  %363 = vmatpush2.msra.mxu0 0.0
  %364 = vmatprep.mubr.f32.mxu0 0.0
  %365 = vmatmul.mubr.f32.gmra.mxu0 %v264
  %v366 = vpop.f32.mrf.mxu0
  %v367 = vadd.f32 0.0, %v366
  %v368 = vpop.f32.mrf.mxu0
  %v369 = vadd.f32 0.0, %v368
  %370 = vmatprep.mubr.f32.mxu0 0.0
  %371 = vmatmul.mubr.f32.gmra.mxu0 %v267
  %v372 = vpop.f32.mrf.mxu0
  %v373 = vadd.f32 0.0, %v372
  %v374 = vpop.f32.mrf.mxu0
  %v375 = vadd.f32 0.0, %v374
  %376 = vmatprep.mubr.f32.mxu0 0.0
  %377 = vmatmul.mubr.f32.gmra.mxu0 %v270
  %v378 = vpop.f32.mrf.mxu0
  %v379 = vadd.f32 0.0, %v378
  %v380 = vpop.f32.mrf.mxu0
  %v381 = vadd.f32 0.0, %v380
  %382 = vmatprep.mubr.f32.mxu0 0.0
  %383 = vmatmul.mubr.f32.gmra.mxu0 %v273
  %v384 = vpop.f32.mrf.mxu0
  %v385 = vadd.f32 0.0, %v384
  %v386 = vpop.f32.mrf.mxu0
  %v387 = vadd.f32 0.0, %v386
  %388 = vdwg.mxu0
  %389 = vmatprep.subr.mxu0 0.0
  %390 = vmatpush1.msra.mxu0 0.0
  %391 = vmatprep.subr.mxu0 0.0
  %392 = vmatpush1.msra.mxu0 0.0
  %393 = vmatprep.subr.mxu0 0.0
  %394 = vmatpush1.msra.mxu0 0.0
  %395 = vmatprep.subr.mxu0 0.0
  %396 = vmatpush1.msra.mxu0 0.0
  %397 = vmatprep.subr.mxu0 0.0
  %398 = vmatpush1.msra.mxu0 0.0
  %399 = vmatprep.subr.mxu0 0.0
  %400 = vmatpush1.msra.mxu0 0.0
  %401 = vmatprep.subr.mxu0 0.0
  %402 = vmatpush1.msra.mxu0 0.0
  %403 = vmatprep.subr.mxu0 0.0
  %404 = vmatpush1.msra.mxu0 0.0
  %405 = vmatprep.subr.mxu0 0.0
  %406 = vmatpush1.msra.mxu0 0.0
  %407 = vmatprep.subr.mxu0 %v286
  %408 = vmatpush1.msra.mxu0 %v283
  %409 = vmatprep.subr.mxu0 %v245
  %410 = vmatpush1.msra.mxu0 %v244
  %411 = vmatprep.subr.mxu0 %v237
  %412 = vmatpush1.msra.mxu0 %v236
  %413 = vmatprep.subr.mxu0 %v229
  %414 = vmatpush1.msra.mxu0 %v228
  %415 = vmatprep.subr.mxu0 %v221
  %416 = vmatpush1.msra.mxu0 %v220
  %417 = vmatprep.subr.mxu0 %v213
  %418 = vmatpush1.msra.mxu0 %v212
  %419 = vmatprep.subr.mxu0 %v205
  %420 = vmatpush1.msra.mxu0 %v204
  %421 = vmatprep.subr.mxu0 0.0
  %422 = vmatpush2.msra.mxu0 0.0
  %423 = vmatprep.subr.mxu0 0.0
  %424 = vmatpush2.msra.mxu0 0.0
  %425 = vmatprep.subr.mxu0 0.0
  %426 = vmatpush2.msra.mxu0 0.0
  %427 = vmatprep.subr.mxu0 0.0
  %428 = vmatpush2.msra.mxu0 0.0
  %429 = vmatprep.subr.mxu0 0.0
  %430 = vmatpush2.msra.mxu0 0.0
  %431 = vmatprep.subr.mxu0 0.0
  %432 = vmatpush2.msra.mxu0 0.0
  %433 = vmatprep.subr.mxu0 0.0
  %434 = vmatpush2.msra.mxu0 0.0
  %435 = vmatprep.subr.mxu0 0.0
  %436 = vmatpush2.msra.mxu0 0.0
  %437 = vmatprep.subr.mxu0 0.0
  %438 = vmatpush2.msra.mxu0 0.0
  %439 = vmatprep.subr.mxu0 0.0
  %440 = vmatpush2.msra.mxu0 0.0
  %441 = vmatprep.subr.mxu0 0.0
  %442 = vmatpush2.msra.mxu0 0.0
  %443 = vmatprep.subr.mxu0 0.0
  %444 = vmatpush2.msra.mxu0 0.0
  %445 = vmatprep.subr.mxu0 0.0
  %446 = vmatpush2.msra.mxu0 0.0
  %447 = vmatprep.subr.mxu0 0.0
  %448 = vmatpush2.msra.mxu0 0.0
  %449 = vmatprep.subr.mxu0 0.0
  %450 = vmatpush2.msra.mxu0 0.0
  %451 = vmatprep.subr.mxu0 0.0
  %452 = vmatpush2.msra.mxu0 0.0
  %453 = vmatprep.mubr.f32.mxu0 0.0
  %454 = vmatmul.mubr.f32.gmra.mxu0 %v264
  %v455 = vpop.f32.mrf.mxu0
  %v456 = vadd.f32 0.0, %v455
  %v457 = vpop.f32.mrf.mxu0
  %v458 = vadd.f32 0.0, %v457
  %459 = vmatprep.mubr.f32.mxu0 0.0
  %460 = vmatmul.mubr.f32.gmra.mxu0 %v267
  %v461 = vpop.f32.mrf.mxu0
  %v462 = vadd.f32 0.0, %v461
  %v463 = vpop.f32.mrf.mxu0
  %v464 = vadd.f32 0.0, %v463
  %465 = vmatprep.mubr.f32.mxu0 0.0
  %466 = vmatmul.mubr.f32.gmra.mxu0 %v270
  %v467 = vpop.f32.mrf.mxu0
  %v468 = vadd.f32 0.0, %v467
  %v469 = vpop.f32.mrf.mxu0
  %v470 = vadd.f32 0.0, %v469
  %471 = vmatprep.mubr.f32.mxu0 0.0
  %472 = vmatmul.mubr.f32.gmra.mxu0 %v273
  %v473 = vpop.f32.mrf.mxu0
  %v474 = vadd.f32 0.0, %v473
  %v475 = vpop.f32.mrf.mxu0
  %v476 = vadd.f32 0.0, %v475
  %477 = vdwg.mxu0
  %478 = vmatprep.subr.mxu0 0.0
  %479 = vmatpush1.msra.mxu0 0.0
  %480 = vmatprep.subr.mxu0 0.0
  %481 = vmatpush1.msra.mxu0 0.0
  %482 = vmatprep.subr.mxu0 0.0
  %483 = vmatpush1.msra.mxu0 0.0
  %484 = vmatprep.subr.mxu0 0.0
  %485 = vmatpush1.msra.mxu0 0.0
  %486 = vmatprep.subr.mxu0 0.0
  %487 = vmatpush1.msra.mxu0 0.0
  %488 = vmatprep.subr.mxu0 0.0
  %489 = vmatpush1.msra.mxu0 0.0
  %490 = vmatprep.subr.mxu0 0.0
  %491 = vmatpush1.msra.mxu0 0.0
  %492 = vmatprep.subr.mxu0 0.0
  %493 = vmatpush1.msra.mxu0 0.0
  %494 = vmatprep.subr.mxu0 0.0
  %495 = vmatpush1.msra.mxu0 0.0
  %496 = vmatprep.subr.mxu0 %v292
  %497 = vmatpush1.msra.mxu0 %v289
  %498 = vmatprep.subr.mxu0 %v247
  %499 = vmatpush1.msra.mxu0 %v246
  %500 = vmatprep.subr.mxu0 %v239
  %501 = vmatpush1.msra.mxu0 %v238
  %502 = vmatprep.subr.mxu0 %v231
  %503 = vmatpush1.msra.mxu0 %v230
  %504 = vmatprep.subr.mxu0 %v223
  %505 = vmatpush1.msra.mxu0 %v222
  %506 = vmatprep.subr.mxu0 %v215
  %507 = vmatpush1.msra.mxu0 %v214
  %508 = vmatprep.subr.mxu0 %v207
  %509 = vmatpush1.msra.mxu0 %v206
  %510 = vmatprep.subr.mxu0 0.0
  %511 = vmatpush2.msra.mxu0 0.0
  %512 = vmatprep.subr.mxu0 0.0
  %513 = vmatpush2.msra.mxu0 0.0
  %514 = vmatprep.subr.mxu0 0.0
  %515 = vmatpush2.msra.mxu0 0.0
  %516 = vmatprep.subr.mxu0 0.0
  %517 = vmatpush2.msra.mxu0 0.0
  %518 = vmatprep.subr.mxu0 0.0
  %519 = vmatpush2.msra.mxu0 0.0
  %520 = vmatprep.subr.mxu0 0.0
  %521 = vmatpush2.msra.mxu0 0.0
  %522 = vmatprep.subr.mxu0 0.0
  %523 = vmatpush2.msra.mxu0 0.0
  %524 = vmatprep.subr.mxu0 0.0
  %525 = vmatpush2.msra.mxu0 0.0
  %526 = vmatprep.subr.mxu0 0.0
  %527 = vmatpush2.msra.mxu0 0.0
  %528 = vmatprep.subr.mxu0 0.0
  %529 = vmatpush2.msra.mxu0 0.0
  %530 = vmatprep.subr.mxu0 0.0
  %531 = vmatpush2.msra.mxu0 0.0
  %532 = vmatprep.subr.mxu0 0.0
  %533 = vmatpush2.msra.mxu0 0.0
  %534 = vmatprep.subr.mxu0 0.0
  %535 = vmatpush2.msra.mxu0 0.0
  %536 = vmatprep.subr.mxu0 0.0
  %537 = vmatpush2.msra.mxu0 0.0
  %538 = vmatprep.subr.mxu0 0.0
  %539 = vmatpush2.msra.mxu0 0.0
  %540 = vmatprep.subr.mxu0 0.0
  %541 = vmatpush2.msra.mxu0 0.0
  %542 = vmatprep.mubr.f32.mxu0 0.0
  %543 = vmatmul.mubr.f32.gmra.mxu0 %v264
  %v544 = vpop.f32.mrf.mxu0
  %v545 = vadd.f32 0.0, %v544
  %v546 = vpop.f32.mrf.mxu0
  %v547 = vadd.f32 0.0, %v546
  %548 = vmatprep.mubr.f32.mxu0 0.0
  %549 = vmatmul.mubr.f32.gmra.mxu0 %v267
  %v550 = vpop.f32.mrf.mxu0
  %v551 = vadd.f32 0.0, %v550
  %v552 = vpop.f32.mrf.mxu0
  %v553 = vadd.f32 0.0, %v552
  %554 = vmatprep.mubr.f32.mxu0 0.0
  %555 = vmatmul.mubr.f32.gmra.mxu0 %v270
  %v556 = vpop.f32.mrf.mxu0
  %v557 = vadd.f32 0.0, %v556
  %v558 = vpop.f32.mrf.mxu0
  %v559 = vadd.f32 0.0, %v558
  %560 = vmatprep.mubr.f32.mxu0 0.0
  %561 = vmatmul.mubr.f32.gmra.mxu0 %v273
  %v562 = vpop.f32.mrf.mxu0
  %v563 = vadd.f32 0.0, %v562
  %v564 = vpop.f32.mrf.mxu0
  %v565 = vadd.f32 0.0, %v564
  %566 = vdwg.mxu0
  %567 = vmatprep.subr.mxu0 0.0
  %568 = vmatpush1.msra.mxu0 0.0
  %569 = vmatprep.subr.mxu0 0.0
  %570 = vmatpush1.msra.mxu0 0.0
  %571 = vmatprep.subr.mxu0 0.0
  %572 = vmatpush1.msra.mxu0 0.0
  %573 = vmatprep.subr.mxu0 0.0
  %574 = vmatpush1.msra.mxu0 0.0
  %575 = vmatprep.subr.mxu0 0.0
  %576 = vmatpush1.msra.mxu0 0.0
  %577 = vmatprep.subr.mxu0 0.0
  %578 = vmatpush1.msra.mxu0 0.0
  %579 = vmatprep.subr.mxu0 0.0
  %580 = vmatpush1.msra.mxu0 0.0
  %581 = vmatprep.subr.mxu0 0.0
  %582 = vmatpush1.msra.mxu0 0.0
  %583 = vmatprep.subr.mxu0 0.0
  %584 = vmatpush1.msra.mxu0 0.0
  %585 = vmatprep.subr.mxu0 %v298
  %586 = vmatpush1.msra.mxu0 %v295
  %587 = vmatprep.subr.mxu0 %v249
  %588 = vmatpush1.msra.mxu0 %v248
  %589 = vmatprep.subr.mxu0 %v241
  %590 = vmatpush1.msra.mxu0 %v240
  %591 = vmatprep.subr.mxu0 %v233
  %592 = vmatpush1.msra.mxu0 %v232
  %593 = vmatprep.subr.mxu0 %v225
  %594 = vmatpush1.msra.mxu0 %v224
  %595 = vmatprep.subr.mxu0 %v217
  %596 = vmatpush1.msra.mxu0 %v216
  %597 = vmatprep.subr.mxu0 %v209
  %598 = vmatpush1.msra.mxu0 %v208
  %599 = vmatprep.subr.mxu0 0.0
  %600 = vmatpush2.msra.mxu0 0.0
  %601 = vmatprep.subr.mxu0 0.0
  %602 = vmatpush2.msra.mxu0 0.0
  %603 = vmatprep.subr.mxu0 0.0
  %604 = vmatpush2.msra.mxu0 0.0
  %605 = vmatprep.subr.mxu0 0.0
  %606 = vmatpush2.msra.mxu0 0.0
  %607 = vmatprep.subr.mxu0 0.0
  %608 = vmatpush2.msra.mxu0 0.0
  %609 = vmatprep.subr.mxu0 0.0
  %610 = vmatpush2.msra.mxu0 0.0
  %611 = vmatprep.subr.mxu0 0.0
  %612 = vmatpush2.msra.mxu0 0.0
  %613 = vmatprep.subr.mxu0 0.0
  %614 = vmatpush2.msra.mxu0 0.0
  %615 = vmatprep.subr.mxu0 0.0
  %616 = vmatpush2.msra.mxu0 0.0
  %617 = vmatprep.subr.mxu0 0.0
  %618 = vmatpush2.msra.mxu0 0.0
  %619 = vmatprep.subr.mxu0 0.0
  %620 = vmatpush2.msra.mxu0 0.0
  %621 = vmatprep.subr.mxu0 0.0
  %622 = vmatpush2.msra.mxu0 0.0
  %623 = vmatprep.subr.mxu0 0.0
  %624 = vmatpush2.msra.mxu0 0.0
  %625 = vmatprep.subr.mxu0 0.0
  %626 = vmatpush2.msra.mxu0 0.0
  %627 = vmatprep.subr.mxu0 0.0
  %628 = vmatpush2.msra.mxu0 0.0
  %629 = vmatprep.subr.mxu0 0.0
  %630 = vmatpush2.msra.mxu0 0.0
  %631 = vmatprep.mubr.f32.mxu0 0.0
  %632 = vmatmul.mubr.f32.gmra.mxu0 %v264
  %v633 = vpop.f32.mrf.mxu0
  %v634 = vadd.f32 0.0, %v633
  %v635 = vpop.f32.mrf.mxu0
  %v636 = vadd.f32 0.0, %v635
  %637 = vmatprep.mubr.f32.mxu0 0.0
  %638 = vmatmul.mubr.f32.gmra.mxu0 %v267
  %v639 = vpop.f32.mrf.mxu0
  %v640 = vadd.f32 0.0, %v639
  %v641 = vpop.f32.mrf.mxu0
  %v642 = vadd.f32 0.0, %v641
  %643 = vmatprep.mubr.f32.mxu0 0.0
  %644 = vmatmul.mubr.f32.gmra.mxu0 %v270
  %v645 = vpop.f32.mrf.mxu0
  %v646 = vadd.f32 0.0, %v645
  %v647 = vpop.f32.mrf.mxu0
  %v648 = vadd.f32 0.0, %v647
  %649 = vmatprep.mubr.f32.mxu0 0.0
  %650 = vmatmul.mubr.f32.gmra.mxu0 %v273
  %v651 = vpop.f32.mrf.mxu0
  %v652 = vadd.f32 0.0, %v651
  %v653 = vpop.f32.mrf.mxu0
  %v654 = vadd.f32 0.0, %v653
  %655 = vdwg.mxu0
  %v656 = vld [vmem:[%s2] sm:$0xff]
  %v657 = vld [vmem:[%s2 + $0x8] sm:$0xff]
  %v658 = vld [vmem:[%s2 + $0x10] sm:$0xff]
  %v659 = vld [vmem:[%s2 + $0x18] sm:$0xff]
  %v660 = vld [vmem:[%s2 + $0x20] sm:$0xff]
  %v661 = vld [vmem:[%s2 + $0x28] sm:$0xff]
  %vm662 = vcmask 261120
  %v664 = vsel %vm662, %v656, 0
  %v667 = vsel %vm662, %v657, 0
  %v670 = vsel %vm662, %v658, 0
  %v673 = vsel %vm662, %v659, 0
  %v676 = vsel %vm662, %v660, 0
  %v679 = vsel %vm662, %v661, 0
  %681 = vmatprep.subr.mxu0 0.0
  %682 = vmatpush1.msra.mxu0 0.0
  %683 = vmatprep.subr.mxu0 0.0
  %684 = vmatpush1.msra.mxu0 0.0
  %685 = vmatprep.subr.mxu0 0.0
  %686 = vmatpush1.msra.mxu0 0.0
  %687 = vmatprep.subr.mxu0 0.0
  %688 = vmatpush1.msra.mxu0 0.0
  %689 = vmatprep.subr.mxu0 0.0
  %690 = vmatpush1.msra.mxu0 0.0
  %691 = vmatprep.subr.mxu0 0.0
  %692 = vmatpush1.msra.mxu0 0.0
  %693 = vmatprep.subr.mxu0 0.0
  %694 = vmatpush1.msra.mxu0 0.0
  %695 = vmatprep.subr.mxu0 0.0
  %696 = vmatpush1.msra.mxu0 0.0
  %697 = vmatprep.subr.mxu0 0.0
  %698 = vmatpush1.msra.mxu0 0.0
  %699 = vmatprep.subr.mxu0 0.0
  %700 = vmatpush1.msra.mxu0 0.0
  %701 = vmatprep.subr.mxu0 0.0
  %702 = vmatpush1.msra.mxu0 0.0
  %703 = vmatprep.subr.mxu0 0.0
  %704 = vmatpush1.msra.mxu0 0.0
  %705 = vmatprep.subr.mxu0 %v387
  %706 = vmatpush1.msra.mxu0 %v385
  %707 = vmatprep.subr.mxu0 %v381
  %708 = vmatpush1.msra.mxu0 %v379
  %709 = vmatprep.subr.mxu0 %v375
  %710 = vmatpush1.msra.mxu0 %v373
  %711 = vmatprep.subr.mxu0 %v369
  %712 = vmatpush1.msra.mxu0 %v367
  %713 = vmatprep.subr.mxu0 0.0
  %714 = vmatpush2.msra.mxu0 0.0
  %715 = vmatprep.subr.mxu0 0.0
  %716 = vmatpush2.msra.mxu0 0.0
  %717 = vmatprep.subr.mxu0 0.0
  %718 = vmatpush2.msra.mxu0 0.0
  %719 = vmatprep.subr.mxu0 0.0
  %720 = vmatpush2.msra.mxu0 0.0
  %721 = vmatprep.subr.mxu0 0.0
  %722 = vmatpush2.msra.mxu0 0.0
  %723 = vmatprep.subr.mxu0 0.0
  %724 = vmatpush2.msra.mxu0 0.0
  %725 = vmatprep.subr.mxu0 0.0
  %726 = vmatpush2.msra.mxu0 0.0
  %727 = vmatprep.subr.mxu0 0.0
  %728 = vmatpush2.msra.mxu0 0.0
  %729 = vmatprep.subr.mxu0 0.0
  %730 = vmatpush2.msra.mxu0 0.0
  %731 = vmatprep.subr.mxu0 0.0
  %732 = vmatpush2.msra.mxu0 0.0
  %733 = vmatprep.subr.mxu0 0.0
  %734 = vmatpush2.msra.mxu0 0.0
  %735 = vmatprep.subr.mxu0 0.0
  %736 = vmatpush2.msra.mxu0 0.0
  %737 = vmatprep.subr.mxu0 0.0
  %738 = vmatpush2.msra.mxu0 0.0
  %739 = vmatprep.subr.mxu0 0.0
  %740 = vmatpush2.msra.mxu0 0.0
  %741 = vmatprep.subr.mxu0 0.0
  %742 = vmatpush2.msra.mxu0 0.0
  %743 = vmatprep.subr.mxu0 0.0
  %744 = vmatpush2.msra.mxu0 0.0
  %745 = vmatprep.mubr.f32.mxu0 0.0
  %746 = vmatmul.mubr.f32.gmra.mxu0 %v664
  %v747 = vpop.f32.mrf.mxu0
  %v748 = vadd.f32 0.0, %v747
  %v749 = vpop.f32.mrf.mxu0
  %v750 = vadd.f32 0.0, %v749
  %751 = vmatprep.mubr.f32.mxu0 0.0
  %752 = vmatmul.mubr.f32.gmra.mxu0 %v667
  %v753 = vpop.f32.mrf.mxu0
  %v754 = vadd.f32 0.0, %v753
  %v755 = vpop.f32.mrf.mxu0
  %v756 = vadd.f32 0.0, %v755
  %757 = vmatprep.mubr.f32.mxu0 0.0
  %758 = vmatmul.mubr.f32.gmra.mxu0 %v670
  %v759 = vpop.f32.mrf.mxu0
  %v760 = vadd.f32 0.0, %v759
  %v761 = vpop.f32.mrf.mxu0
  %v762 = vadd.f32 0.0, %v761
  %763 = vmatprep.mubr.f32.mxu0 0.0
  %764 = vmatmul.mubr.f32.gmra.mxu0 %v673
  %v765 = vpop.f32.mrf.mxu0
  %v766 = vadd.f32 0.0, %v765
  %v767 = vpop.f32.mrf.mxu0
  %v768 = vadd.f32 0.0, %v767
  %769 = vmatprep.mubr.f32.mxu0 0.0
  %770 = vmatmul.mubr.f32.gmra.mxu0 %v676
  %v771 = vpop.f32.mrf.mxu0
  %v772 = vpop.f32.mrf.mxu0
  %v773 = vadd.f32 0.0, %v772
  %774 = vmatprep.mubr.f32.mxu0 0.0
  %775 = vmatmul.mubr.f32.gmra.mxu0 %v679
  %v776 = vpop.f32.mrf.mxu0
  %v777 = vpop.f32.mrf.mxu0
  %v778 = vadd.f32 0.0, %v777
  %779 = vdwg.mxu0
  %780 = vmatprep.subr.mxu0 0.0
  %781 = vmatpush1.msra.mxu0 0.0
  %782 = vmatprep.subr.mxu0 0.0
  %783 = vmatpush1.msra.mxu0 0.0
  %784 = vmatprep.subr.mxu0 0.0
  %785 = vmatpush1.msra.mxu0 0.0
  %786 = vmatprep.subr.mxu0 0.0
  %787 = vmatpush1.msra.mxu0 0.0
  %788 = vmatprep.subr.mxu0 0.0
  %789 = vmatpush1.msra.mxu0 0.0
  %790 = vmatprep.subr.mxu0 0.0
  %791 = vmatpush1.msra.mxu0 0.0
  %792 = vmatprep.subr.mxu0 0.0
  %793 = vmatpush1.msra.mxu0 0.0
  %794 = vmatprep.subr.mxu0 0.0
  %795 = vmatpush1.msra.mxu0 0.0
  %796 = vmatprep.subr.mxu0 0.0
  %797 = vmatpush1.msra.mxu0 0.0
  %798 = vmatprep.subr.mxu0 0.0
  %799 = vmatpush1.msra.mxu0 0.0
  %800 = vmatprep.subr.mxu0 0.0
  %801 = vmatpush1.msra.mxu0 0.0
  %802 = vmatprep.subr.mxu0 0.0
  %803 = vmatpush1.msra.mxu0 0.0
  %804 = vmatprep.subr.mxu0 %v476
  %805 = vmatpush1.msra.mxu0 %v474
  %806 = vmatprep.subr.mxu0 %v470
  %807 = vmatpush1.msra.mxu0 %v468
  %808 = vmatprep.subr.mxu0 %v464
  %809 = vmatpush1.msra.mxu0 %v462
  %810 = vmatprep.subr.mxu0 %v458
  %811 = vmatpush1.msra.mxu0 %v456
  %812 = vmatprep.subr.mxu0 0.0
  %813 = vmatpush2.msra.mxu0 0.0
  %814 = vmatprep.subr.mxu0 0.0
  %815 = vmatpush2.msra.mxu0 0.0
  %816 = vmatprep.subr.mxu0 0.0
  %817 = vmatpush2.msra.mxu0 0.0
  %818 = vmatprep.subr.mxu0 0.0
  %819 = vmatpush2.msra.mxu0 0.0
  %820 = vmatprep.subr.mxu0 0.0
  %821 = vmatpush2.msra.mxu0 0.0
  %822 = vmatprep.subr.mxu0 0.0
  %823 = vmatpush2.msra.mxu0 0.0
  %824 = vmatprep.subr.mxu0 0.0
  %825 = vmatpush2.msra.mxu0 0.0
  %826 = vmatprep.subr.mxu0 0.0
  %827 = vmatpush2.msra.mxu0 0.0
  %828 = vmatprep.subr.mxu0 0.0
  %829 = vmatpush2.msra.mxu0 0.0
  %830 = vmatprep.subr.mxu0 0.0
  %831 = vmatpush2.msra.mxu0 0.0
  %832 = vmatprep.subr.mxu0 0.0
  %833 = vmatpush2.msra.mxu0 0.0
  %834 = vmatprep.subr.mxu0 0.0
  %835 = vmatpush2.msra.mxu0 0.0
  %836 = vmatprep.subr.mxu0 0.0
  %837 = vmatpush2.msra.mxu0 0.0
  %838 = vmatprep.subr.mxu0 0.0
  %839 = vmatpush2.msra.mxu0 0.0
  %840 = vmatprep.subr.mxu0 0.0
  %841 = vmatpush2.msra.mxu0 0.0
  %842 = vmatprep.subr.mxu0 0.0
  %843 = vmatpush2.msra.mxu0 0.0
  %844 = vmatprep.mubr.f32.mxu0 0.0
  %845 = vmatmul.mubr.f32.gmra.mxu0 %v664
  %v846 = vpop.f32.mrf.mxu0
  %v847 = vadd.f32 0.0, %v846
  %v848 = vpop.f32.mrf.mxu0
  %v849 = vadd.f32 0.0, %v848
  %850 = vmatprep.mubr.f32.mxu0 0.0
  %851 = vmatmul.mubr.f32.gmra.mxu0 %v667
  %v852 = vpop.f32.mrf.mxu0
  %v853 = vadd.f32 0.0, %v852
  %v854 = vpop.f32.mrf.mxu0
  %v855 = vadd.f32 0.0, %v854
  %856 = vmatprep.mubr.f32.mxu0 0.0
  %857 = vmatmul.mubr.f32.gmra.mxu0 %v670
  %v858 = vpop.f32.mrf.mxu0
  %v859 = vadd.f32 0.0, %v858
  %v860 = vpop.f32.mrf.mxu0
  %v861 = vadd.f32 0.0, %v860
  %862 = vmatprep.mubr.f32.mxu0 0.0
  %863 = vmatmul.mubr.f32.gmra.mxu0 %v673
  %v864 = vpop.f32.mrf.mxu0
  %v865 = vadd.f32 0.0, %v864
  %v866 = vpop.f32.mrf.mxu0
  %v867 = vadd.f32 0.0, %v866
  %868 = vmatprep.mubr.f32.mxu0 0.0
  %869 = vmatmul.mubr.f32.gmra.mxu0 %v676
  %v870 = vpop.f32.mrf.mxu0
  %v871 = vadd.f32 0.0, %v870
  %v872 = vpop.f32.mrf.mxu0
  %v873 = vadd.f32 0.0, %v872
  %874 = vmatprep.mubr.f32.mxu0 0.0
  %875 = vmatmul.mubr.f32.gmra.mxu0 %v679
  %v876 = vpop.f32.mrf.mxu0
  %v877 = vadd.f32 0.0, %v876
  %v878 = vpop.f32.mrf.mxu0
  %v879 = vadd.f32 0.0, %v878
  %880 = vdwg.mxu0
  %881 = vmatprep.subr.mxu0 0.0
  %882 = vmatpush1.msra.mxu0 0.0
  %883 = vmatprep.subr.mxu0 0.0
  %884 = vmatpush1.msra.mxu0 0.0
  %885 = vmatprep.subr.mxu0 0.0
  %886 = vmatpush1.msra.mxu0 0.0
  %887 = vmatprep.subr.mxu0 0.0
  %888 = vmatpush1.msra.mxu0 0.0
  %889 = vmatprep.subr.mxu0 0.0
  %890 = vmatpush1.msra.mxu0 0.0
  %891 = vmatprep.subr.mxu0 0.0
  %892 = vmatpush1.msra.mxu0 0.0
  %893 = vmatprep.subr.mxu0 0.0
  %894 = vmatpush1.msra.mxu0 0.0
  %895 = vmatprep.subr.mxu0 0.0
  %896 = vmatpush1.msra.mxu0 0.0
  %897 = vmatprep.subr.mxu0 0.0
  %898 = vmatpush1.msra.mxu0 0.0
  %899 = vmatprep.subr.mxu0 0.0
  %900 = vmatpush1.msra.mxu0 0.0
  %901 = vmatprep.subr.mxu0 0.0
  %902 = vmatpush1.msra.mxu0 0.0
  %903 = vmatprep.subr.mxu0 0.0
  %904 = vmatpush1.msra.mxu0 0.0
  %905 = vmatprep.subr.mxu0 %v565
  %906 = vmatpush1.msra.mxu0 %v563
  %907 = vmatprep.subr.mxu0 %v559
  %908 = vmatpush1.msra.mxu0 %v557
  %909 = vmatprep.subr.mxu0 %v553
  %910 = vmatpush1.msra.mxu0 %v551
  %911 = vmatprep.subr.mxu0 %v547
  %912 = vmatpush1.msra.mxu0 %v545
  %913 = vmatprep.subr.mxu0 0.0
  %914 = vmatpush2.msra.mxu0 0.0
  %915 = vmatprep.subr.mxu0 0.0
  %916 = vmatpush2.msra.mxu0 0.0
  %917 = vmatprep.subr.mxu0 0.0
  %918 = vmatpush2.msra.mxu0 0.0
  %919 = vmatprep.subr.mxu0 0.0
  %920 = vmatpush2.msra.mxu0 0.0
  %921 = vmatprep.subr.mxu0 0.0
  %922 = vmatpush2.msra.mxu0 0.0
  %923 = vmatprep.subr.mxu0 0.0
  %924 = vmatpush2.msra.mxu0 0.0
  %925 = vmatprep.subr.mxu0 0.0
  %926 = vmatpush2.msra.mxu0 0.0
  %927 = vmatprep.subr.mxu0 0.0
  %928 = vmatpush2.msra.mxu0 0.0
  %929 = vmatprep.subr.mxu0 0.0
  %930 = vmatpush2.msra.mxu0 0.0
  %931 = vmatprep.subr.mxu0 0.0
  %932 = vmatpush2.msra.mxu0 0.0
  %933 = vmatprep.subr.mxu0 0.0
  %934 = vmatpush2.msra.mxu0 0.0
  %935 = vmatprep.subr.mxu0 0.0
  %936 = vmatpush2.msra.mxu0 0.0
  %937 = vmatprep.subr.mxu0 0.0
  %938 = vmatpush2.msra.mxu0 0.0
  %939 = vmatprep.subr.mxu0 0.0
  %940 = vmatpush2.msra.mxu0 0.0
  %941 = vmatprep.subr.mxu0 0.0
  %942 = vmatpush2.msra.mxu0 0.0
  %943 = vmatprep.subr.mxu0 0.0
  %944 = vmatpush2.msra.mxu0 0.0
  %945 = vmatprep.mubr.f32.mxu0 0.0
  %946 = vmatmul.mubr.f32.gmra.mxu0 %v664
  %v947 = vpop.f32.mrf.mxu0
  %v948 = vadd.f32 0.0, %v947
  %v949 = vpop.f32.mrf.mxu0
  %v950 = vadd.f32 0.0, %v949
  %951 = vmatprep.mubr.f32.mxu0 0.0
  %952 = vmatmul.mubr.f32.gmra.mxu0 %v667
  %v953 = vpop.f32.mrf.mxu0
  %v954 = vadd.f32 0.0, %v953
  %v955 = vpop.f32.mrf.mxu0
  %v956 = vadd.f32 0.0, %v955
  %957 = vmatprep.mubr.f32.mxu0 0.0
  %958 = vmatmul.mubr.f32.gmra.mxu0 %v670
  %v959 = vpop.f32.mrf.mxu0
  %v960 = vadd.f32 0.0, %v959
  %v961 = vpop.f32.mrf.mxu0
  %v962 = vadd.f32 0.0, %v961
  %963 = vmatprep.mubr.f32.mxu0 0.0
  %964 = vmatmul.mubr.f32.gmra.mxu0 %v673
  %v965 = vpop.f32.mrf.mxu0
  %v966 = vadd.f32 0.0, %v965
  %v967 = vpop.f32.mrf.mxu0
  %v968 = vadd.f32 0.0, %v967
  %969 = vmatprep.mubr.f32.mxu0 0.0
  %970 = vmatmul.mubr.f32.gmra.mxu0 %v676
  %v971 = vpop.f32.mrf.mxu0
  %v972 = vadd.f32 0.0, %v971
  %v973 = vpop.f32.mrf.mxu0
  %v974 = vadd.f32 0.0, %v973
  %975 = vmatprep.mubr.f32.mxu0 0.0
  %976 = vmatmul.mubr.f32.gmra.mxu0 %v679
  %v977 = vpop.f32.mrf.mxu0
  %v978 = vadd.f32 0.0, %v977
  %v979 = vpop.f32.mrf.mxu0
  %v980 = vadd.f32 0.0, %v979
  %981 = vdwg.mxu0
  %982 = vmatprep.subr.mxu0 0.0
  %983 = vmatpush1.msra.mxu0 0.0
  %984 = vmatprep.subr.mxu0 0.0
  %985 = vmatpush1.msra.mxu0 0.0
  %986 = vmatprep.subr.mxu0 0.0
  %987 = vmatpush1.msra.mxu0 0.0
  %988 = vmatprep.subr.mxu0 0.0
  %989 = vmatpush1.msra.mxu0 0.0
  %990 = vmatprep.subr.mxu0 0.0
  %991 = vmatpush1.msra.mxu0 0.0
  %992 = vmatprep.subr.mxu0 0.0
  %993 = vmatpush1.msra.mxu0 0.0
  %994 = vmatprep.subr.mxu0 0.0
  %995 = vmatpush1.msra.mxu0 0.0
  %996 = vmatprep.subr.mxu0 0.0
  %997 = vmatpush1.msra.mxu0 0.0
  %998 = vmatprep.subr.mxu0 0.0
  %999 = vmatpush1.msra.mxu0 0.0
  %1000 = vmatprep.subr.mxu0 0.0
  %1001 = vmatpush1.msra.mxu0 0.0
  %1002 = vmatprep.subr.mxu0 0.0
  %1003 = vmatpush1.msra.mxu0 0.0
  %1004 = vmatprep.subr.mxu0 0.0
  %1005 = vmatpush1.msra.mxu0 0.0
  %1006 = vmatprep.subr.mxu0 %v654
  %1007 = vmatpush1.msra.mxu0 %v652
  %1008 = vmatprep.subr.mxu0 %v648
  %1009 = vmatpush1.msra.mxu0 %v646
  %1010 = vmatprep.subr.mxu0 %v642
  %1011 = vmatpush1.msra.mxu0 %v640
  %1012 = vmatprep.subr.mxu0 %v636
  %1013 = vmatpush1.msra.mxu0 %v634
  %1014 = vmatprep.subr.mxu0 0.0
  %1015 = vmatpush2.msra.mxu0 0.0
  %1016 = vmatprep.subr.mxu0 0.0
  %1017 = vmatpush2.msra.mxu0 0.0
  %1018 = vmatprep.subr.mxu0 0.0
  %1019 = vmatpush2.msra.mxu0 0.0
  %1020 = vmatprep.subr.mxu0 0.0
  %1021 = vmatpush2.msra.mxu0 0.0
  %1022 = vmatprep.subr.mxu0 0.0
  %1023 = vmatpush2.msra.mxu0 0.0
  %1024 = vmatprep.subr.mxu0 0.0
  %1025 = vmatpush2.msra.mxu0 0.0
  %1026 = vmatprep.subr.mxu0 0.0
  %1027 = vmatpush2.msra.mxu0 0.0
  %1028 = vmatprep.subr.mxu0 0.0
  %1029 = vmatpush2.msra.mxu0 0.0
  %1030 = vmatprep.subr.mxu0 0.0
  %1031 = vmatpush2.msra.mxu0 0.0
  %1032 = vmatprep.subr.mxu0 0.0
  %1033 = vmatpush2.msra.mxu0 0.0
  %1034 = vmatprep.subr.mxu0 0.0
  %1035 = vmatpush2.msra.mxu0 0.0
  %1036 = vmatprep.subr.mxu0 0.0
  %1037 = vmatpush2.msra.mxu0 0.0
  %1038 = vmatprep.subr.mxu0 0.0
  %1039 = vmatpush2.msra.mxu0 0.0
  %1040 = vmatprep.subr.mxu0 0.0
  %1041 = vmatpush2.msra.mxu0 0.0
  %1042 = vmatprep.subr.mxu0 0.0
  %1043 = vmatpush2.msra.mxu0 0.0
  %1044 = vmatprep.subr.mxu0 0.0
  %1045 = vmatpush2.msra.mxu0 0.0
  %1046 = vmatprep.mubr.f32.mxu0 0.0
  %1047 = vmatmul.mubr.f32.gmra.mxu0 %v664
  %v1048 = vpop.f32.mrf.mxu0
  %v1049 = vadd.f32 0.0, %v1048
  %v1050 = vpop.f32.mrf.mxu0
  %v1051 = vadd.f32 0.0, %v1050
  %1052 = vmatprep.mubr.f32.mxu0 0.0
  %1053 = vmatmul.mubr.f32.gmra.mxu0 %v667
  %v1054 = vpop.f32.mrf.mxu0
  %v1055 = vadd.f32 0.0, %v1054
  %v1056 = vpop.f32.mrf.mxu0
  %v1057 = vadd.f32 0.0, %v1056
  %1058 = vmatprep.mubr.f32.mxu0 0.0
  %1059 = vmatmul.mubr.f32.gmra.mxu0 %v670
  %v1060 = vpop.f32.mrf.mxu0
  %v1061 = vadd.f32 0.0, %v1060
  %v1062 = vpop.f32.mrf.mxu0
  %1063 = vmatprep.mubr.f32.mxu0 0.0
  %1064 = vmatmul.mubr.f32.gmra.mxu0 %v673
  %v1065 = vpop.f32.mrf.mxu0
  %v1066 = vadd.f32 0.0, %v1065
  %v1067 = vpop.f32.mrf.mxu0
  %1068 = vmatprep.mubr.f32.mxu0 0.0
  %1069 = vmatmul.mubr.f32.gmra.mxu0 %v676
  %v1070 = vpop.f32.mrf.mxu0
  %v1071 = vadd.f32 0.0, %v1070
  %v1072 = vpop.f32.mrf.mxu0
  %v1073 = vadd.f32 0.0, %v1072
  %1074 = vmatprep.mubr.f32.mxu0 0.0
  %1075 = vmatmul.mubr.f32.gmra.mxu0 %v679
  %v1076 = vpop.f32.mrf.mxu0
  %v1077 = vadd.f32 0.0, %v1076
  %v1078 = vpop.f32.mrf.mxu0
  %v1079 = vadd.f32 0.0, %v1078
  %1080 = vdwg.mxu0
  %v1081 = vld [vmem:[%s3] sm:$0xff]
  %v1082 = vld [vmem:[%s3 + $0x8] sm:$0xff]
  %1084 = vset.pattern.permute.xlu0 0
  %1085 = vperm.xlu0 %1084, %v1081
  %v1086 = vpop.permute.xlu0 %1085
  %1089 = vset.pattern.permute.xlu0 0
  %1090 = vperm.xlu0 %1089, %v1082
  %v1091 = vpop.permute.xlu0 %1090
  %v1093 = vadd.f32 %v748, %v1086
  %v1094 = vadd.f32 %v750, %v1086
  %v1095 = vadd.f32 %v847, %v1086
  %v1096 = vadd.f32 %v849, %v1086
  %v1097 = vadd.f32 %v948, %v1086
  %v1098 = vadd.f32 %v950, %v1086
  %v1099 = vadd.f32 %v1049, %v1086
  %v1100 = vadd.f32 %v1051, %v1086
  %v1101 = vadd.f32 %v754, %v1091
  %v1102 = vadd.f32 %v756, %v1091
  %v1103 = vadd.f32 %v853, %v1091
  %v1104 = vadd.f32 %v855, %v1091
  %v1105 = vadd.f32 %v954, %v1091
  %v1106 = vadd.f32 %v956, %v1091
  %v1107 = vadd.f32 %v1055, %v1091
  %v1108 = vadd.f32 %v1057, %v1091
  %v1109 = vmax.f32 %v1093, 0.0
  %v1110 = vmax.f32 %v1094, 0.0
  %v1111 = vmax.f32 %v1095, 0.0
  %v1112 = vmax.f32 %v1096, 0.0
  %v1113 = vmax.f32 %v1097, 0.0
  %v1114 = vmax.f32 %v1098, 0.0
  %v1115 = vmax.f32 %v1099, 0.0
  %v1116 = vmax.f32 %v1100, 0.0
  %v1117 = vmax.f32 %v1101, 0.0
  %v1118 = vmax.f32 %v1102, 0.0
  %v1119 = vmax.f32 %v1103, 0.0
  %v1120 = vmax.f32 %v1104, 0.0
  %v1121 = vmax.f32 %v1105, 0.0
  %v1122 = vmax.f32 %v1106, 0.0
  %v1123 = vmax.f32 %v1107, 0.0
  %v1124 = vmax.f32 %v1108, 0.0
  %v1125 = vld [vmem:[%s4] sm:$0xff]
  %v1126 = vld [vmem:[%s4 + $0x8] sm:$0xff]
  %v1127 = vld [vmem:[%s4 + $0x10] sm:$0xff]
  %v1128 = vld [vmem:[%s4 + $0x18] sm:$0xff]
  %v1129 = vld [vmem:[%s5] sm:$0xff]
  %v1130 = vld [vmem:[%s5 + $0x8] sm:$0xff]
  %v1131 = vld [vmem:[%s5 + $0x10] sm:$0xff]
  %v1132 = vld [vmem:[%s5 + $0x18] sm:$0xff]
  %1134 = vset.pattern.permute.xlu0 0
  %1135 = vperm.xlu0 %1134, %v1129
  %v1136 = vpop.permute.xlu0 %1135
  %1139 = vset.pattern.permute.xlu0 0
  %1140 = vperm.xlu0 %1139, %v1130
  %v1141 = vpop.permute.xlu0 %1140
  %1144 = vset.pattern.permute.xlu0 0
  %1145 = vperm.xlu0 %1144, %v1131
  %v1146 = vpop.permute.xlu0 %1145
  %1149 = vset.pattern.permute.xlu0 0
  %1150 = vperm.xlu0 %1149, %v1132
  %v1151 = vpop.permute.xlu0 %1150
  %vm1153 = vcmask 130048
  %v1155 = vsel %vm1153, %v1125, 0
  %v1158 = vsel %vm1153, %v1126, 0
  %v1161 = vsel %vm1153, %v1127, 0
  %v1164 = vsel %vm1153, %v1128, 0
  %1166 = vmatprep.subr.mxu0 0.0
  %1167 = vmatpush1.msra.mxu0 0.0
  %1168 = vmatprep.subr.mxu0 0.0
  %1169 = vmatpush1.msra.mxu0 0.0
  %1170 = vmatprep.subr.mxu0 0.0
  %1171 = vmatpush1.msra.mxu0 0.0
  %1172 = vmatprep.subr.mxu0 0.0
  %1173 = vmatpush1.msra.mxu0 0.0
  %1174 = vmatprep.subr.mxu0 0.0
  %1175 = vmatpush1.msra.mxu0 0.0
  %1176 = vmatprep.subr.mxu0 0.0
  %1177 = vmatpush1.msra.mxu0 0.0
  %1178 = vmatprep.subr.mxu0 0.0
  %1179 = vmatpush1.msra.mxu0 0.0
  %1180 = vmatprep.subr.mxu0 0.0
  %1181 = vmatpush1.msra.mxu0 0.0
  %1182 = vmatprep.subr.mxu0 0.0
  %1183 = vmatpush1.msra.mxu0 0.0
  %1184 = vmatprep.subr.mxu0 0.0
  %1185 = vmatpush1.msra.mxu0 0.0
  %1186 = vmatprep.subr.mxu0 0.0
  %1187 = vmatpush1.msra.mxu0 0.0
  %1188 = vmatprep.subr.mxu0 0.0
  %1189 = vmatpush1.msra.mxu0 0.0
  %1190 = vmatprep.subr.mxu0 0.0
  %1191 = vmatpush1.msra.mxu0 0.0
  %1192 = vmatprep.subr.mxu0 0.0
  %1193 = vmatpush1.msra.mxu0 0.0
  %1194 = vmatprep.subr.mxu0 %v1118
  %1195 = vmatpush1.msra.mxu0 %v1117
  %1196 = vmatprep.subr.mxu0 %v1110
  %1197 = vmatpush1.msra.mxu0 %v1109
  %1198 = vmatprep.subr.mxu0 0.0
  %1199 = vmatpush2.msra.mxu0 0.0
  %1200 = vmatprep.subr.mxu0 0.0
  %1201 = vmatpush2.msra.mxu0 0.0
  %1202 = vmatprep.subr.mxu0 0.0
  %1203 = vmatpush2.msra.mxu0 0.0
  %1204 = vmatprep.subr.mxu0 0.0
  %1205 = vmatpush2.msra.mxu0 0.0
  %1206 = vmatprep.subr.mxu0 0.0
  %1207 = vmatpush2.msra.mxu0 0.0
  %1208 = vmatprep.subr.mxu0 0.0
  %1209 = vmatpush2.msra.mxu0 0.0
  %1210 = vmatprep.subr.mxu0 0.0
  %1211 = vmatpush2.msra.mxu0 0.0
  %1212 = vmatprep.subr.mxu0 0.0
  %1213 = vmatpush2.msra.mxu0 0.0
  %1214 = vmatprep.subr.mxu0 0.0
  %1215 = vmatpush2.msra.mxu0 0.0
  %1216 = vmatprep.subr.mxu0 0.0
  %1217 = vmatpush2.msra.mxu0 0.0
  %1218 = vmatprep.subr.mxu0 0.0
  %1219 = vmatpush2.msra.mxu0 0.0
  %1220 = vmatprep.subr.mxu0 0.0
  %1221 = vmatpush2.msra.mxu0 0.0
  %1222 = vmatprep.subr.mxu0 0.0
  %1223 = vmatpush2.msra.mxu0 0.0
  %1224 = vmatprep.subr.mxu0 0.0
  %1225 = vmatpush2.msra.mxu0 0.0
  %1226 = vmatprep.subr.mxu0 0.0
  %1227 = vmatpush2.msra.mxu0 0.0
  %1228 = vmatprep.subr.mxu0 0.0
  %1229 = vmatpush2.msra.mxu0 0.0
  %1230 = vmatprep.mubr.f32.mxu0 0.0
  %1231 = vmatmul.mubr.f32.gmra.mxu0 %v1155
  %v1232 = vpop.f32.mrf.mxu0
  %v1233 = vadd.f32 %v1136, %v1232
  %v1234 = vpop.f32.mrf.mxu0
  %v1235 = vadd.f32 %v1136, %v1234
  %1236 = vmatprep.mubr.f32.mxu0 0.0
  %1237 = vmatmul.mubr.f32.gmra.mxu0 %v1158
  %v1238 = vpop.f32.mrf.mxu0
  %v1239 = vadd.f32 %v1141, %v1238
  %v1240 = vpop.f32.mrf.mxu0
  %v1241 = vadd.f32 %v1141, %v1240
  %1242 = vmatprep.mubr.f32.mxu0 0.0
  %1243 = vmatmul.mubr.f32.gmra.mxu0 %v1161
  %v1244 = vpop.f32.mrf.mxu0
  %v1245 = vadd.f32 %v1146, %v1244
  %v1246 = vpop.f32.mrf.mxu0
  %v1247 = vadd.f32 %v1146, %v1246
  %1248 = vmatprep.mubr.f32.mxu0 0.0
  %1249 = vmatmul.mubr.f32.gmra.mxu0 %v1164
  %v1250 = vpop.f32.mrf.mxu0
  %v1251 = vadd.f32 %v1151, %v1250
  %v1252 = vpop.f32.mrf.mxu0
  %v1253 = vadd.f32 %v1151, %v1252
  %1254 = vdwg.mxu0
  %1255 = vmatprep.subr.mxu0 0.0
  %1256 = vmatpush1.msra.mxu0 0.0
  %1257 = vmatprep.subr.mxu0 0.0
  %1258 = vmatpush1.msra.mxu0 0.0
  %1259 = vmatprep.subr.mxu0 0.0
  %1260 = vmatpush1.msra.mxu0 0.0
  %1261 = vmatprep.subr.mxu0 0.0
  %1262 = vmatpush1.msra.mxu0 0.0
  %1263 = vmatprep.subr.mxu0 0.0
  %1264 = vmatpush1.msra.mxu0 0.0
  %1265 = vmatprep.subr.mxu0 0.0
  %1266 = vmatpush1.msra.mxu0 0.0
  %1267 = vmatprep.subr.mxu0 0.0
  %1268 = vmatpush1.msra.mxu0 0.0
  %1269 = vmatprep.subr.mxu0 0.0
  %1270 = vmatpush1.msra.mxu0 0.0
  %1271 = vmatprep.subr.mxu0 0.0
  %1272 = vmatpush1.msra.mxu0 0.0
  %1273 = vmatprep.subr.mxu0 0.0
  %1274 = vmatpush1.msra.mxu0 0.0
  %1275 = vmatprep.subr.mxu0 0.0
  %1276 = vmatpush1.msra.mxu0 0.0
  %1277 = vmatprep.subr.mxu0 0.0
  %1278 = vmatpush1.msra.mxu0 0.0
  %1279 = vmatprep.subr.mxu0 0.0
  %1280 = vmatpush1.msra.mxu0 0.0
  %1281 = vmatprep.subr.mxu0 0.0
  %1282 = vmatpush1.msra.mxu0 0.0
  %1283 = vmatprep.subr.mxu0 %v1120
  %1284 = vmatpush1.msra.mxu0 %v1119
  %1285 = vmatprep.subr.mxu0 %v1112
  %1286 = vmatpush1.msra.mxu0 %v1111
  %1287 = vmatprep.subr.mxu0 0.0
  %1288 = vmatpush2.msra.mxu0 0.0
  %1289 = vmatprep.subr.mxu0 0.0
  %1290 = vmatpush2.msra.mxu0 0.0
  %1291 = vmatprep.subr.mxu0 0.0
  %1292 = vmatpush2.msra.mxu0 0.0
  %1293 = vmatprep.subr.mxu0 0.0
  %1294 = vmatpush2.msra.mxu0 0.0
  %1295 = vmatprep.subr.mxu0 0.0
  %1296 = vmatpush2.msra.mxu0 0.0
  %1297 = vmatprep.subr.mxu0 0.0
  %1298 = vmatpush2.msra.mxu0 0.0
  %1299 = vmatprep.subr.mxu0 0.0
  %1300 = vmatpush2.msra.mxu0 0.0
  %1301 = vmatprep.subr.mxu0 0.0
  %1302 = vmatpush2.msra.mxu0 0.0
  %1303 = vmatprep.subr.mxu0 0.0
  %1304 = vmatpush2.msra.mxu0 0.0
  %1305 = vmatprep.subr.mxu0 0.0
  %1306 = vmatpush2.msra.mxu0 0.0
  %1307 = vmatprep.subr.mxu0 0.0
  %1308 = vmatpush2.msra.mxu0 0.0
  %1309 = vmatprep.subr.mxu0 0.0
  %1310 = vmatpush2.msra.mxu0 0.0
  %1311 = vmatprep.subr.mxu0 0.0
  %1312 = vmatpush2.msra.mxu0 0.0
  %1313 = vmatprep.subr.mxu0 0.0
  %1314 = vmatpush2.msra.mxu0 0.0
  %1315 = vmatprep.subr.mxu0 0.0
  %1316 = vmatpush2.msra.mxu0 0.0
  %1317 = vmatprep.subr.mxu0 0.0
  %1318 = vmatpush2.msra.mxu0 0.0
  %1319 = vmatprep.mubr.f32.mxu0 0.0
  %1320 = vmatmul.mubr.f32.gmra.mxu0 %v1155
  %v1321 = vpop.f32.mrf.mxu0
  %v1322 = vadd.f32 %v1136, %v1321
  %v1323 = vpop.f32.mrf.mxu0
  %v1324 = vadd.f32 %v1136, %v1323
  %1325 = vmatprep.mubr.f32.mxu0 0.0
  %1326 = vmatmul.mubr.f32.gmra.mxu0 %v1158
  %v1327 = vpop.f32.mrf.mxu0
  %v1328 = vadd.f32 %v1141, %v1327
  %v1329 = vpop.f32.mrf.mxu0
  %v1330 = vadd.f32 %v1141, %v1329
  %1331 = vmatprep.mubr.f32.mxu0 0.0
  %1332 = vmatmul.mubr.f32.gmra.mxu0 %v1161
  %v1333 = vpop.f32.mrf.mxu0
  %v1334 = vadd.f32 %v1146, %v1333
  %v1335 = vpop.f32.mrf.mxu0
  %v1336 = vadd.f32 %v1146, %v1335
  %1337 = vmatprep.mubr.f32.mxu0 0.0
  %1338 = vmatmul.mubr.f32.gmra.mxu0 %v1164
  %v1339 = vpop.f32.mrf.mxu0
  %v1340 = vadd.f32 %v1151, %v1339
  %v1341 = vpop.f32.mrf.mxu0
  %v1342 = vadd.f32 %v1151, %v1341
  %1343 = vdwg.mxu0
  %1344 = vmatprep.subr.mxu0 0.0
  %1345 = vmatpush1.msra.mxu0 0.0
  %1346 = vmatprep.subr.mxu0 0.0
  %1347 = vmatpush1.msra.mxu0 0.0
  %1348 = vmatprep.subr.mxu0 0.0
  %1349 = vmatpush1.msra.mxu0 0.0
  %1350 = vmatprep.subr.mxu0 0.0
  %1351 = vmatpush1.msra.mxu0 0.0
  %1352 = vmatprep.subr.mxu0 0.0
  %1353 = vmatpush1.msra.mxu0 0.0
  %1354 = vmatprep.subr.mxu0 0.0
  %1355 = vmatpush1.msra.mxu0 0.0
  %1356 = vmatprep.subr.mxu0 0.0
  %1357 = vmatpush1.msra.mxu0 0.0
  %1358 = vmatprep.subr.mxu0 0.0
  %1359 = vmatpush1.msra.mxu0 0.0
  %1360 = vmatprep.subr.mxu0 0.0
  %1361 = vmatpush1.msra.mxu0 0.0
  %1362 = vmatprep.subr.mxu0 0.0
  %1363 = vmatpush1.msra.mxu0 0.0
  %1364 = vmatprep.subr.mxu0 0.0
  %1365 = vmatpush1.msra.mxu0 0.0
  %1366 = vmatprep.subr.mxu0 0.0
  %1367 = vmatpush1.msra.mxu0 0.0
  %1368 = vmatprep.subr.mxu0 0.0
  %1369 = vmatpush1.msra.mxu0 0.0
  %1370 = vmatprep.subr.mxu0 0.0
  %1371 = vmatpush1.msra.mxu0 0.0
  %1372 = vmatprep.subr.mxu0 %v1122
  %1373 = vmatpush1.msra.mxu0 %v1121
  %1374 = vmatprep.subr.mxu0 %v1114
  %1375 = vmatpush1.msra.mxu0 %v1113
  %1376 = vmatprep.subr.mxu0 0.0
  %1377 = vmatpush2.msra.mxu0 0.0
  %1378 = vmatprep.subr.mxu0 0.0
  %1379 = vmatpush2.msra.mxu0 0.0
  %1380 = vmatprep.subr.mxu0 0.0
  %1381 = vmatpush2.msra.mxu0 0.0
  %1382 = vmatprep.subr.mxu0 0.0
  %1383 = vmatpush2.msra.mxu0 0.0
  %1384 = vmatprep.subr.mxu0 0.0
  %1385 = vmatpush2.msra.mxu0 0.0
  %1386 = vmatprep.subr.mxu0 0.0
  %1387 = vmatpush2.msra.mxu0 0.0
  %1388 = vmatprep.subr.mxu0 0.0
  %1389 = vmatpush2.msra.mxu0 0.0
  %1390 = vmatprep.subr.mxu0 0.0
  %1391 = vmatpush2.msra.mxu0 0.0
  %1392 = vmatprep.subr.mxu0 0.0
  %1393 = vmatpush2.msra.mxu0 0.0
  %1394 = vmatprep.subr.mxu0 0.0
  %1395 = vmatpush2.msra.mxu0 0.0
  %1396 = vmatprep.subr.mxu0 0.0
  %1397 = vmatpush2.msra.mxu0 0.0
  %1398 = vmatprep.subr.mxu0 0.0
  %1399 = vmatpush2.msra.mxu0 0.0
  %1400 = vmatprep.subr.mxu0 0.0
  %1401 = vmatpush2.msra.mxu0 0.0
  %1402 = vmatprep.subr.mxu0 0.0
  %1403 = vmatpush2.msra.mxu0 0.0
  %1404 = vmatprep.subr.mxu0 0.0
  %1405 = vmatpush2.msra.mxu0 0.0
  %1406 = vmatprep.subr.mxu0 0.0
  %1407 = vmatpush2.msra.mxu0 0.0
  %1408 = vmatprep.mubr.f32.mxu0 0.0
  %1409 = vmatmul.mubr.f32.gmra.mxu0 %v1155
  %v1410 = vpop.f32.mrf.mxu0
  %v1411 = vadd.f32 %v1136, %v1410
  %v1412 = vpop.f32.mrf.mxu0
  %v1413 = vadd.f32 %v1136, %v1412
  %1414 = vmatprep.mubr.f32.mxu0 0.0
  %1415 = vmatmul.mubr.f32.gmra.mxu0 %v1158
  %v1416 = vpop.f32.mrf.mxu0
  %v1417 = vadd.f32 %v1141, %v1416
  %v1418 = vpop.f32.mrf.mxu0
  %v1419 = vadd.f32 %v1141, %v1418
  %1420 = vmatprep.mubr.f32.mxu0 0.0
  %1421 = vmatmul.mubr.f32.gmra.mxu0 %v1161
  %v1422 = vpop.f32.mrf.mxu0
  %v1423 = vadd.f32 %v1146, %v1422
  %v1424 = vpop.f32.mrf.mxu0
  %v1425 = vadd.f32 %v1146, %v1424
  %1426 = vmatprep.mubr.f32.mxu0 0.0
  %1427 = vmatmul.mubr.f32.gmra.mxu0 %v1164
  %v1428 = vpop.f32.mrf.mxu0
  %v1429 = vadd.f32 %v1151, %v1428
  %v1430 = vpop.f32.mrf.mxu0
  %v1431 = vadd.f32 %v1151, %v1430
  %1432 = vdwg.mxu0
  %1433 = vmatprep.subr.mxu0 0.0
  %1434 = vmatpush1.msra.mxu0 0.0
  %1435 = vmatprep.subr.mxu0 0.0
  %1436 = vmatpush1.msra.mxu0 0.0
  %1437 = vmatprep.subr.mxu0 0.0
  %1438 = vmatpush1.msra.mxu0 0.0
  %1439 = vmatprep.subr.mxu0 0.0
  %1440 = vmatpush1.msra.mxu0 0.0
  %1441 = vmatprep.subr.mxu0 0.0
  %1442 = vmatpush1.msra.mxu0 0.0
  %1443 = vmatprep.subr.mxu0 0.0
  %1444 = vmatpush1.msra.mxu0 0.0
  %1445 = vmatprep.subr.mxu0 0.0
  %1446 = vmatpush1.msra.mxu0 0.0
  %1447 = vmatprep.subr.mxu0 0.0
  %1448 = vmatpush1.msra.mxu0 0.0
  %1449 = vmatprep.subr.mxu0 0.0
  %1450 = vmatpush1.msra.mxu0 0.0
  %1451 = vmatprep.subr.mxu0 0.0
  %1452 = vmatpush1.msra.mxu0 0.0
  %1453 = vmatprep.subr.mxu0 0.0
  %1454 = vmatpush1.msra.mxu0 0.0
  %1455 = vmatprep.subr.mxu0 0.0
  %1456 = vmatpush1.msra.mxu0 0.0
  %1457 = vmatprep.subr.mxu0 0.0
  %1458 = vmatpush1.msra.mxu0 0.0
  %1459 = vmatprep.subr.mxu0 0.0
  %1460 = vmatpush1.msra.mxu0 0.0
  %1461 = vmatprep.subr.mxu0 %v1124
  %1462 = vmatpush1.msra.mxu0 %v1123
  %1463 = vmatprep.subr.mxu0 %v1116
  %1464 = vmatpush1.msra.mxu0 %v1115
  %1465 = vmatprep.subr.mxu0 0.0
  %1466 = vmatpush2.msra.mxu0 0.0
  %1467 = vmatprep.subr.mxu0 0.0
  %1468 = vmatpush2.msra.mxu0 0.0
  %1469 = vmatprep.subr.mxu0 0.0
  %1470 = vmatpush2.msra.mxu0 0.0
  %1471 = vmatprep.subr.mxu0 0.0
  %1472 = vmatpush2.msra.mxu0 0.0
  %1473 = vmatprep.subr.mxu0 0.0
  %1474 = vmatpush2.msra.mxu0 0.0
  %1475 = vmatprep.subr.mxu0 0.0
  %1476 = vmatpush2.msra.mxu0 0.0
  %1477 = vmatprep.subr.mxu0 0.0
  %1478 = vmatpush2.msra.mxu0 0.0
  %1479 = vmatprep.subr.mxu0 0.0
  %1480 = vmatpush2.msra.mxu0 0.0
  %1481 = vmatprep.subr.mxu0 0.0
  %1482 = vmatpush2.msra.mxu0 0.0
  %1483 = vmatprep.subr.mxu0 0.0
  %1484 = vmatpush2.msra.mxu0 0.0
  %1485 = vmatprep.subr.mxu0 0.0
  %1486 = vmatpush2.msra.mxu0 0.0
  %1487 = vmatprep.subr.mxu0 0.0
  %1488 = vmatpush2.msra.mxu0 0.0
  %1489 = vmatprep.subr.mxu0 0.0
  %1490 = vmatpush2.msra.mxu0 0.0
  %1491 = vmatprep.subr.mxu0 0.0
  %1492 = vmatpush2.msra.mxu0 0.0
  %1493 = vmatprep.subr.mxu0 0.0
  %1494 = vmatpush2.msra.mxu0 0.0
  %1495 = vmatprep.subr.mxu0 0.0
  %1496 = vmatpush2.msra.mxu0 0.0
  %1497 = vmatprep.mubr.f32.mxu0 0.0
  %1498 = vmatmul.mubr.f32.gmra.mxu0 %v1155
  %v1499 = vpop.f32.mrf.mxu0
  %v1500 = vadd.f32 %v1136, %v1499
  %v1501 = vpop.f32.mrf.mxu0
  %v1502 = vadd.f32 %v1136, %v1501
  %1503 = vmatprep.mubr.f32.mxu0 0.0
  %1504 = vmatmul.mubr.f32.gmra.mxu0 %v1158
  %v1505 = vpop.f32.mrf.mxu0
  %v1506 = vadd.f32 %v1141, %v1505
  %v1507 = vpop.f32.mrf.mxu0
  %v1508 = vadd.f32 %v1141, %v1507
  %1509 = vmatprep.mubr.f32.mxu0 0.0
  %1510 = vmatmul.mubr.f32.gmra.mxu0 %v1161
  %v1511 = vpop.f32.mrf.mxu0
  %v1512 = vadd.f32 %v1146, %v1511
  %v1513 = vpop.f32.mrf.mxu0
  %v1514 = vadd.f32 %v1146, %v1513
  %1515 = vmatprep.mubr.f32.mxu0 0.0
  %1516 = vmatmul.mubr.f32.gmra.mxu0 %v1164
  %v1517 = vpop.f32.mrf.mxu0
  %v1518 = vadd.f32 %v1151, %v1517
  %v1519 = vpop.f32.mrf.mxu0
  %v1520 = vadd.f32 %v1151, %v1519
  %1521 = vdwg.mxu0
  %v1522 = vmax.f32 %v1233, 0.0
  %v1523 = vmax.f32 %v1235, 0.0
  %v1524 = vmax.f32 %v1322, 0.0
  %v1525 = vmax.f32 %v1324, 0.0
  %v1526 = vmax.f32 %v1411, 0.0
  %v1527 = vmax.f32 %v1413, 0.0
  %v1528 = vmax.f32 %v1500, 0.0
  %v1529 = vmax.f32 %v1502, 0.0
  %v1530 = vmax.f32 %v1239, 0.0
  %v1531 = vmax.f32 %v1241, 0.0
  %v1532 = vmax.f32 %v1328, 0.0
  %v1533 = vmax.f32 %v1330, 0.0
  %v1534 = vmax.f32 %v1417, 0.0
  %v1535 = vmax.f32 %v1419, 0.0
  %v1536 = vmax.f32 %v1506, 0.0
  %v1537 = vmax.f32 %v1508, 0.0
  %v1538 = vmax.f32 %v1245, 0.0
  %v1539 = vmax.f32 %v1247, 0.0
  %v1540 = vmax.f32 %v1334, 0.0
  %v1541 = vmax.f32 %v1336, 0.0
  %v1542 = vmax.f32 %v1423, 0.0
  %v1543 = vmax.f32 %v1425, 0.0
  %v1544 = vmax.f32 %v1512, 0.0
  %v1545 = vmax.f32 %v1514, 0.0
  %v1546 = vmax.f32 %v1251, 0.0
  %v1547 = vmax.f32 %v1253, 0.0
  %v1548 = vmax.f32 %v1340, 0.0
  %v1549 = vmax.f32 %v1342, 0.0
  %v1550 = vmax.f32 %v1429, 0.0
  %v1551 = vmax.f32 %v1431, 0.0
  %v1552 = vmax.f32 %v1518, 0.0
  %v1553 = vmax.f32 %v1520, 0.0
  %v1554 = vmax.f32 %v1522, %v1523
  %v1555 = vmax.f32 %v1530, %v1531
  %v1556 = vmax.f32 %v1538, %v1539
  %v1557 = vmax.f32 %v1546, %v1547
  %v1558 = vmax.f32 %v1524, %v1525
  %v1559 = vmax.f32 %v1532, %v1533
  %v1560 = vmax.f32 %v1540, %v1541
  %v1561 = vmax.f32 %v1548, %v1549
  %v1562 = vmax.f32 %v1526, %v1527
  %v1563 = vmax.f32 %v1534, %v1535
  %v1564 = vmax.f32 %v1542, %v1543
  %v1565 = vmax.f32 %v1550, %v1551
  %v1566 = vmax.f32 %v1528, %v1529
  %v1567 = vmax.f32 %v1536, %v1537
  %v1568 = vmax.f32 %v1544, %v1545
  %v1569 = vmax.f32 %v1552, %v1553
  %v1570 = vmax.f32 %v1554, %v1558
  %v1571 = vmax.f32 %v1555, %v1559
  %v1572 = vmax.f32 %v1556, %v1560
  %v1573 = vmax.f32 %v1557, %v1561
  %v1574 = vmax.f32 %v1562, %v1566
  %v1575 = vmax.f32 %v1563, %v1567
  %v1576 = vmax.f32 %v1564, %v1568
  %v1577 = vmax.f32 %v1565, %v1569
  %v1578 = vmax.f32 %v1570, %v1574
  %v1579 = vmax.f32 %v1571, %v1575
  %v1580 = vmax.f32 %v1572, %v1576
  %v1581 = vmax.f32 %v1573, %v1577
  %v1582 = vadd.f32 %v760, %v773
  %v1583 = vadd.f32 %v762, %v871
  %v1584 = vadd.f32 %v859, %v873
  %v1585 = vadd.f32 %v861, %v972
  %v1586 = vadd.f32 %v960, %v974
  %v1587 = vadd.f32 %v962, %v1071
  %v1588 = vadd.f32 %v1061, %v1073
  %v1589 = vadd.f32 %v766, %v778
  %v1590 = vadd.f32 %v768, %v877
  %v1591 = vadd.f32 %v865, %v879
  %v1592 = vadd.f32 %v867, %v978
  %v1593 = vadd.f32 %v966, %v980
  %v1594 = vadd.f32 %v968, %v1077
  %v1595 = vadd.f32 %v1066, %v1079
  %v1596 = vld [vmem:[%s6] sm:$0xff]
  %v1597 = vld [vmem:[%s6 + $0x8] sm:$0xff]
  %1599 = vset.pattern.permute.xlu0 0
  %1600 = vperm.xlu0 %1599, %v1596
  %v1601 = vpop.permute.xlu0 %1600
  %1604 = vset.pattern.permute.xlu0 0
  %1605 = vperm.xlu0 %1604, %v1597
  %v1606 = vpop.permute.xlu0 %1605
  %v1608 = vadd.f32 %v1582, %v1601
  %v1609 = vadd.f32 %v1583, %v1601
  %v1610 = vadd.f32 %v1584, %v1601
  %v1611 = vadd.f32 %v1585, %v1601
  %v1612 = vadd.f32 %v1586, %v1601
  %v1613 = vadd.f32 %v1587, %v1601
  %v1614 = vadd.f32 %v1588, %v1601
  %v1615 = vadd.f32 %v1589, %v1606
  %v1616 = vadd.f32 %v1590, %v1606
  %v1617 = vadd.f32 %v1591, %v1606
  %v1618 = vadd.f32 %v1592, %v1606
  %v1619 = vadd.f32 %v1593, %v1606
  %v1620 = vadd.f32 %v1594, %v1606
  %v1621 = vadd.f32 %v1595, %v1606
  %v1622 = vmax.f32 %v1608, 0.0
  %v1623 = vmax.f32 %v1609, 0.0
  %v1624 = vmax.f32 %v1610, 0.0
  %v1625 = vmax.f32 %v1611, 0.0
  %v1626 = vmax.f32 %v1612, 0.0
  %v1627 = vmax.f32 %v1613, 0.0
  %v1628 = vmax.f32 %v1614, 0.0
  %v1629 = vmax.f32 %v1615, 0.0
  %v1630 = vmax.f32 %v1616, 0.0
  %v1631 = vmax.f32 %v1617, 0.0
  %v1632 = vmax.f32 %v1618, 0.0
  %v1633 = vmax.f32 %v1619, 0.0
  %v1634 = vmax.f32 %v1620, 0.0
  %v1635 = vmax.f32 %v1621, 0.0
  %v1636 = vld [vmem:[%s7] sm:$0xff]
  %v1637 = vld [vmem:[%s7 + $0x8] sm:$0xff]
  %v1638 = vld [vmem:[%s7 + $0x10] sm:$0xff]
  %v1639 = vld [vmem:[%s7 + $0x18] sm:$0xff]
  %v1640 = vld [vmem:[%s7 + $0x20] sm:$0xff]
  %v1641 = vld [vmem:[%s7 + $0x28] sm:$0xff]
  %v1642 = vld [vmem:[%s7 + $0x30] sm:$0xff]
  %v1643 = vld [vmem:[%s7 + $0x38] sm:$0xff]
  %v1645 = vsel %vm1153, %v1636, 0
  %v1648 = vsel %vm1153, %v1637, 0
  %v1651 = vsel %vm1153, %v1638, 0
  %v1654 = vsel %vm1153, %v1639, 0
  %v1657 = vsel %vm1153, %v1640, 0
  %v1660 = vsel %vm1153, %v1641, 0
  %v1663 = vsel %vm1153, %v1642, 0
  %v1666 = vsel %vm1153, %v1643, 0
  %1668 = vmatprep.subr.mxu0 0.0
  %1669 = vmatpush1.msra.mxu0 0.0
  %1670 = vmatprep.subr.mxu0 0.0
  %1671 = vmatpush1.msra.mxu0 0.0
  %1672 = vmatprep.subr.mxu0 0.0
  %1673 = vmatpush1.msra.mxu0 0.0
  %1674 = vmatprep.subr.mxu0 0.0
  %1675 = vmatpush1.msra.mxu0 0.0
  %1676 = vmatprep.subr.mxu0 0.0
  %1677 = vmatpush1.msra.mxu0 0.0
  %1678 = vmatprep.subr.mxu0 0.0
  %1679 = vmatpush1.msra.mxu0 0.0
  %1680 = vmatprep.subr.mxu0 0.0
  %1681 = vmatpush1.msra.mxu0 0.0
  %1682 = vmatprep.subr.mxu0 0.0
  %1683 = vmatpush1.msra.mxu0 0.0
  %1684 = vmatprep.subr.mxu0 0.0
  %1685 = vmatpush1.msra.mxu0 0.0
  %1686 = vmatprep.subr.mxu0 0.0
  %1687 = vmatpush1.msra.mxu0 0.0
  %1688 = vmatprep.subr.mxu0 0.0
  %1689 = vmatpush1.msra.mxu0 0.0
  %1690 = vmatprep.subr.mxu0 0.0
  %1691 = vmatpush1.msra.mxu0 0.0
  %1692 = vmatprep.subr.mxu0 0.0
  %1693 = vmatpush1.msra.mxu0 0.0
  %1694 = vmatprep.subr.mxu0 0.0
  %1695 = vmatpush1.msra.mxu0 0.0
  %1696 = vmatprep.subr.mxu0 %v1630
  %1697 = vmatpush1.msra.mxu0 %v1629
  %1698 = vmatprep.subr.mxu0 %v1623
  %1699 = vmatpush1.msra.mxu0 %v1622
  %1700 = vmatprep.subr.mxu0 0.0
  %1701 = vmatpush2.msra.mxu0 0.0
  %1702 = vmatprep.subr.mxu0 0.0
  %1703 = vmatpush2.msra.mxu0 0.0
  %1704 = vmatprep.subr.mxu0 0.0
  %1705 = vmatpush2.msra.mxu0 0.0
  %1706 = vmatprep.subr.mxu0 0.0
  %1707 = vmatpush2.msra.mxu0 0.0
  %1708 = vmatprep.subr.mxu0 0.0
  %1709 = vmatpush2.msra.mxu0 0.0
  %1710 = vmatprep.subr.mxu0 0.0
  %1711 = vmatpush2.msra.mxu0 0.0
  %1712 = vmatprep.subr.mxu0 0.0
  %1713 = vmatpush2.msra.mxu0 0.0
  %1714 = vmatprep.subr.mxu0 0.0
  %1715 = vmatpush2.msra.mxu0 0.0
  %1716 = vmatprep.subr.mxu0 0.0
  %1717 = vmatpush2.msra.mxu0 0.0
  %1718 = vmatprep.subr.mxu0 0.0
  %1719 = vmatpush2.msra.mxu0 0.0
  %1720 = vmatprep.subr.mxu0 0.0
  %1721 = vmatpush2.msra.mxu0 0.0
  %1722 = vmatprep.subr.mxu0 0.0
  %1723 = vmatpush2.msra.mxu0 0.0
  %1724 = vmatprep.subr.mxu0 0.0
  %1725 = vmatpush2.msra.mxu0 0.0
  %1726 = vmatprep.subr.mxu0 0.0
  %1727 = vmatpush2.msra.mxu0 0.0
  %1728 = vmatprep.subr.mxu0 0.0
  %1729 = vmatpush2.msra.mxu0 0.0
  %1730 = vmatprep.subr.mxu0 0.0
  %1731 = vmatpush2.msra.mxu0 0.0
  %1732 = vmatprep.mubr.f32.mxu0 0.0
  %1733 = vmatmul.mubr.f32.gmra.mxu0 %v1645
  %v1734 = vpop.f32.mrf.mxu0
  %v1735 = vadd.f32 0.0, %v1734
  %v1736 = vpop.f32.mrf.mxu0
  %v1737 = vadd.f32 0.0, %v1736
  %1738 = vmatprep.mubr.f32.mxu0 0.0
  %1739 = vmatmul.mubr.f32.gmra.mxu0 %v1648
  %v1740 = vpop.f32.mrf.mxu0
  %v1741 = vadd.f32 0.0, %v1740
  %v1742 = vpop.f32.mrf.mxu0
  %v1743 = vadd.f32 0.0, %v1742
  %1744 = vmatprep.mubr.f32.mxu0 0.0
  %1745 = vmatmul.mubr.f32.gmra.mxu0 %v1651
  %v1746 = vpop.f32.mrf.mxu0
  %v1747 = vadd.f32 0.0, %v1746
  %v1748 = vpop.f32.mrf.mxu0
  %v1749 = vadd.f32 0.0, %v1748
  %1750 = vmatprep.mubr.f32.mxu0 0.0
  %1751 = vmatmul.mubr.f32.gmra.mxu0 %v1654
  %v1752 = vpop.f32.mrf.mxu0
  %v1753 = vadd.f32 0.0, %v1752
  %v1754 = vpop.f32.mrf.mxu0
  %v1755 = vadd.f32 0.0, %v1754
  %1756 = vmatprep.mubr.f32.mxu0 0.0
  %1757 = vmatmul.mubr.f32.gmra.mxu0 %v1657
  %v1758 = vpop.f32.mrf.mxu0
  %v1759 = vpop.f32.mrf.mxu0
  %v1760 = vadd.f32 0.0, %v1759
  %1761 = vmatprep.mubr.f32.mxu0 0.0
  %1762 = vmatmul.mubr.f32.gmra.mxu0 %v1660
  %v1763 = vpop.f32.mrf.mxu0
  %v1764 = vpop.f32.mrf.mxu0
  %v1765 = vadd.f32 0.0, %v1764
  %1766 = vmatprep.mubr.f32.mxu0 0.0
  %1767 = vmatmul.mubr.f32.gmra.mxu0 %v1663
  %v1768 = vpop.f32.mrf.mxu0
  %v1769 = vpop.f32.mrf.mxu0
  %v1770 = vadd.f32 0.0, %v1769
  %1771 = vmatprep.mubr.f32.mxu0 0.0
  %1772 = vmatmul.mubr.f32.gmra.mxu0 %v1666
  %v1773 = vpop.f32.mrf.mxu0
  %v1774 = vpop.f32.mrf.mxu0
  %v1775 = vadd.f32 0.0, %v1774
  %1776 = vdwg.mxu0
  %1777 = vmatprep.subr.mxu0 0.0
  %1778 = vmatpush1.msra.mxu0 0.0
  %1779 = vmatprep.subr.mxu0 0.0
  %1780 = vmatpush1.msra.mxu0 0.0
  %1781 = vmatprep.subr.mxu0 0.0
  %1782 = vmatpush1.msra.mxu0 0.0
  %1783 = vmatprep.subr.mxu0 0.0
  %1784 = vmatpush1.msra.mxu0 0.0
  %1785 = vmatprep.subr.mxu0 0.0
  %1786 = vmatpush1.msra.mxu0 0.0
  %1787 = vmatprep.subr.mxu0 0.0
  %1788 = vmatpush1.msra.mxu0 0.0
  %1789 = vmatprep.subr.mxu0 0.0
  %1790 = vmatpush1.msra.mxu0 0.0
  %1791 = vmatprep.subr.mxu0 0.0
  %1792 = vmatpush1.msra.mxu0 0.0
  %1793 = vmatprep.subr.mxu0 0.0
  %1794 = vmatpush1.msra.mxu0 0.0
  %1795 = vmatprep.subr.mxu0 0.0
  %1796 = vmatpush1.msra.mxu0 0.0
  %1797 = vmatprep.subr.mxu0 0.0
  %1798 = vmatpush1.msra.mxu0 0.0
  %1799 = vmatprep.subr.mxu0 0.0
  %1800 = vmatpush1.msra.mxu0 0.0
  %1801 = vmatprep.subr.mxu0 0.0
  %1802 = vmatpush1.msra.mxu0 0.0
  %1803 = vmatprep.subr.mxu0 0.0
  %1804 = vmatpush1.msra.mxu0 0.0
  %1805 = vmatprep.subr.mxu0 %v1632
  %1806 = vmatpush1.msra.mxu0 %v1631
  %1807 = vmatprep.subr.mxu0 %v1625
  %1808 = vmatpush1.msra.mxu0 %v1624
  %1809 = vmatprep.subr.mxu0 0.0
  %1810 = vmatpush2.msra.mxu0 0.0
  %1811 = vmatprep.subr.mxu0 0.0
  %1812 = vmatpush2.msra.mxu0 0.0
  %1813 = vmatprep.subr.mxu0 0.0
  %1814 = vmatpush2.msra.mxu0 0.0
  %1815 = vmatprep.subr.mxu0 0.0
  %1816 = vmatpush2.msra.mxu0 0.0
  %1817 = vmatprep.subr.mxu0 0.0
  %1818 = vmatpush2.msra.mxu0 0.0
  %1819 = vmatprep.subr.mxu0 0.0
  %1820 = vmatpush2.msra.mxu0 0.0
  %1821 = vmatprep.subr.mxu0 0.0
  %1822 = vmatpush2.msra.mxu0 0.0
  %1823 = vmatprep.subr.mxu0 0.0
  %1824 = vmatpush2.msra.mxu0 0.0
  %1825 = vmatprep.subr.mxu0 0.0
  %1826 = vmatpush2.msra.mxu0 0.0
  %1827 = vmatprep.subr.mxu0 0.0
  %1828 = vmatpush2.msra.mxu0 0.0
  %1829 = vmatprep.subr.mxu0 0.0
  %1830 = vmatpush2.msra.mxu0 0.0
  %1831 = vmatprep.subr.mxu0 0.0
  %1832 = vmatpush2.msra.mxu0 0.0
  %1833 = vmatprep.subr.mxu0 0.0
  %1834 = vmatpush2.msra.mxu0 0.0
  %1835 = vmatprep.subr.mxu0 0.0
  %1836 = vmatpush2.msra.mxu0 0.0
  %1837 = vmatprep.subr.mxu0 0.0
  %1838 = vmatpush2.msra.mxu0 0.0
  %1839 = vmatprep.subr.mxu0 0.0
  %1840 = vmatpush2.msra.mxu0 0.0
  %1841 = vmatprep.mubr.f32.mxu0 0.0
  %1842 = vmatmul.mubr.f32.gmra.mxu0 %v1645
  %v1843 = vpop.f32.mrf.mxu0
  %v1844 = vadd.f32 0.0, %v1843
  %v1845 = vpop.f32.mrf.mxu0
  %v1846 = vadd.f32 0.0, %v1845
  %1847 = vmatprep.mubr.f32.mxu0 0.0
  %1848 = vmatmul.mubr.f32.gmra.mxu0 %v1648
  %v1849 = vpop.f32.mrf.mxu0
  %v1850 = vadd.f32 0.0, %v1849
  %v1851 = vpop.f32.mrf.mxu0
  %v1852 = vadd.f32 0.0, %v1851
  %1853 = vmatprep.mubr.f32.mxu0 0.0
  %1854 = vmatmul.mubr.f32.gmra.mxu0 %v1651
  %v1855 = vpop.f32.mrf.mxu0
  %v1856 = vadd.f32 0.0, %v1855
  %v1857 = vpop.f32.mrf.mxu0
  %v1858 = vadd.f32 0.0, %v1857
  %1859 = vmatprep.mubr.f32.mxu0 0.0
  %1860 = vmatmul.mubr.f32.gmra.mxu0 %v1654
  %v1861 = vpop.f32.mrf.mxu0
  %v1862 = vadd.f32 0.0, %v1861
  %v1863 = vpop.f32.mrf.mxu0
  %v1864 = vadd.f32 0.0, %v1863
  %1865 = vmatprep.mubr.f32.mxu0 0.0
  %1866 = vmatmul.mubr.f32.gmra.mxu0 %v1657
  %v1867 = vpop.f32.mrf.mxu0
  %v1868 = vadd.f32 0.0, %v1867
  %v1869 = vpop.f32.mrf.mxu0
  %v1870 = vadd.f32 0.0, %v1869
  %1871 = vmatprep.mubr.f32.mxu0 0.0
  %1872 = vmatmul.mubr.f32.gmra.mxu0 %v1660
  %v1873 = vpop.f32.mrf.mxu0
  %v1874 = vadd.f32 0.0, %v1873
  %v1875 = vpop.f32.mrf.mxu0
  %v1876 = vadd.f32 0.0, %v1875
  %1877 = vmatprep.mubr.f32.mxu0 0.0
  %1878 = vmatmul.mubr.f32.gmra.mxu0 %v1663
  %v1879 = vpop.f32.mrf.mxu0
  %v1880 = vadd.f32 0.0, %v1879
  %v1881 = vpop.f32.mrf.mxu0
  %v1882 = vadd.f32 0.0, %v1881
  %1883 = vmatprep.mubr.f32.mxu0 0.0
  %1884 = vmatmul.mubr.f32.gmra.mxu0 %v1666
  %v1885 = vpop.f32.mrf.mxu0
  %v1886 = vadd.f32 0.0, %v1885
  %v1887 = vpop.f32.mrf.mxu0
  %v1888 = vadd.f32 0.0, %v1887
  %1889 = vdwg.mxu0
  %1890 = vmatprep.subr.mxu0 0.0
  %1891 = vmatpush1.msra.mxu0 0.0
  %1892 = vmatprep.subr.mxu0 0.0
  %1893 = vmatpush1.msra.mxu0 0.0
  %1894 = vmatprep.subr.mxu0 0.0
  %1895 = vmatpush1.msra.mxu0 0.0
  %1896 = vmatprep.subr.mxu0 0.0
  %1897 = vmatpush1.msra.mxu0 0.0
  %1898 = vmatprep.subr.mxu0 0.0
  %1899 = vmatpush1.msra.mxu0 0.0
  %1900 = vmatprep.subr.mxu0 0.0
  %1901 = vmatpush1.msra.mxu0 0.0
  %1902 = vmatprep.subr.mxu0 0.0
  %1903 = vmatpush1.msra.mxu0 0.0
  %1904 = vmatprep.subr.mxu0 0.0
  %1905 = vmatpush1.msra.mxu0 0.0
  %1906 = vmatprep.subr.mxu0 0.0
  %1907 = vmatpush1.msra.mxu0 0.0
  %1908 = vmatprep.subr.mxu0 0.0
  %1909 = vmatpush1.msra.mxu0 0.0
  %1910 = vmatprep.subr.mxu0 0.0
  %1911 = vmatpush1.msra.mxu0 0.0
  %1912 = vmatprep.subr.mxu0 0.0
  %1913 = vmatpush1.msra.mxu0 0.0
  %1914 = vmatprep.subr.mxu0 0.0
  %1915 = vmatpush1.msra.mxu0 0.0
  %1916 = vmatprep.subr.mxu0 0.0
  %1917 = vmatpush1.msra.mxu0 0.0
  %1918 = vmatprep.subr.mxu0 %v1634
  %1919 = vmatpush1.msra.mxu0 %v1633
  %1920 = vmatprep.subr.mxu0 %v1627
  %1921 = vmatpush1.msra.mxu0 %v1626
  %1922 = vmatprep.subr.mxu0 0.0
  %1923 = vmatpush2.msra.mxu0 0.0
  %1924 = vmatprep.subr.mxu0 0.0
  %1925 = vmatpush2.msra.mxu0 0.0
  %1926 = vmatprep.subr.mxu0 0.0
  %1927 = vmatpush2.msra.mxu0 0.0
  %1928 = vmatprep.subr.mxu0 0.0
  %1929 = vmatpush2.msra.mxu0 0.0
  %1930 = vmatprep.subr.mxu0 0.0
  %1931 = vmatpush2.msra.mxu0 0.0
  %1932 = vmatprep.subr.mxu0 0.0
  %1933 = vmatpush2.msra.mxu0 0.0
  %1934 = vmatprep.subr.mxu0 0.0
  %1935 = vmatpush2.msra.mxu0 0.0
  %1936 = vmatprep.subr.mxu0 0.0
  %1937 = vmatpush2.msra.mxu0 0.0
  %1938 = vmatprep.subr.mxu0 0.0
  %1939 = vmatpush2.msra.mxu0 0.0
  %1940 = vmatprep.subr.mxu0 0.0
  %1941 = vmatpush2.msra.mxu0 0.0
  %1942 = vmatprep.subr.mxu0 0.0
  %1943 = vmatpush2.msra.mxu0 0.0
  %1944 = vmatprep.subr.mxu0 0.0
  %1945 = vmatpush2.msra.mxu0 0.0
  %1946 = vmatprep.subr.mxu0 0.0
  %1947 = vmatpush2.msra.mxu0 0.0
  %1948 = vmatprep.subr.mxu0 0.0
  %1949 = vmatpush2.msra.mxu0 0.0
  %1950 = vmatprep.subr.mxu0 0.0
  %1951 = vmatpush2.msra.mxu0 0.0
  %1952 = vmatprep.subr.mxu0 0.0
  %1953 = vmatpush2.msra.mxu0 0.0
  %1954 = vmatprep.mubr.f32.mxu0 0.0
  %1955 = vmatmul.mubr.f32.gmra.mxu0 %v1645
  %v1956 = vpop.f32.mrf.mxu0
  %v1957 = vadd.f32 0.0, %v1956
  %v1958 = vpop.f32.mrf.mxu0
  %v1959 = vadd.f32 0.0, %v1958
  %1960 = vmatprep.mubr.f32.mxu0 0.0
  %1961 = vmatmul.mubr.f32.gmra.mxu0 %v1648
  %v1962 = vpop.f32.mrf.mxu0
  %v1963 = vadd.f32 0.0, %v1962
  %v1964 = vpop.f32.mrf.mxu0
  %v1965 = vadd.f32 0.0, %v1964
  %1966 = vmatprep.mubr.f32.mxu0 0.0
  %1967 = vmatmul.mubr.f32.gmra.mxu0 %v1651
  %v1968 = vpop.f32.mrf.mxu0
  %v1969 = vadd.f32 0.0, %v1968
  %v1970 = vpop.f32.mrf.mxu0
  %v1971 = vadd.f32 0.0, %v1970
  %1972 = vmatprep.mubr.f32.mxu0 0.0
  %1973 = vmatmul.mubr.f32.gmra.mxu0 %v1654
  %v1974 = vpop.f32.mrf.mxu0
  %v1975 = vadd.f32 0.0, %v1974
  %v1976 = vpop.f32.mrf.mxu0
  %v1977 = vadd.f32 0.0, %v1976
  %1978 = vmatprep.mubr.f32.mxu0 0.0
  %1979 = vmatmul.mubr.f32.gmra.mxu0 %v1657
  %v1980 = vpop.f32.mrf.mxu0
  %v1981 = vadd.f32 0.0, %v1980
  %v1982 = vpop.f32.mrf.mxu0
  %v1983 = vadd.f32 0.0, %v1982
  %1984 = vmatprep.mubr.f32.mxu0 0.0
  %1985 = vmatmul.mubr.f32.gmra.mxu0 %v1660
  %v1986 = vpop.f32.mrf.mxu0
  %v1987 = vadd.f32 0.0, %v1986
  %v1988 = vpop.f32.mrf.mxu0
  %v1989 = vadd.f32 0.0, %v1988
  %1990 = vmatprep.mubr.f32.mxu0 0.0
  %1991 = vmatmul.mubr.f32.gmra.mxu0 %v1663
  %v1992 = vpop.f32.mrf.mxu0
  %v1993 = vadd.f32 0.0, %v1992
  %v1994 = vpop.f32.mrf.mxu0
  %v1995 = vadd.f32 0.0, %v1994
  %1996 = vmatprep.mubr.f32.mxu0 0.0
  %1997 = vmatmul.mubr.f32.gmra.mxu0 %v1666
  %v1998 = vpop.f32.mrf.mxu0
  %v1999 = vadd.f32 0.0, %v1998
  %v2000 = vpop.f32.mrf.mxu0
  %v2001 = vadd.f32 0.0, %v2000
  %2002 = vdwg.mxu0
  %2003 = vmatprep.subr.mxu0 0.0
  %2004 = vmatpush1.msra.mxu0 0.0
  %2005 = vmatprep.subr.mxu0 0.0
  %2006 = vmatpush1.msra.mxu0 0.0
  %2007 = vmatprep.subr.mxu0 0.0
  %2008 = vmatpush1.msra.mxu0 0.0
  %2009 = vmatprep.subr.mxu0 0.0
  %2010 = vmatpush1.msra.mxu0 0.0
  %2011 = vmatprep.subr.mxu0 0.0
  %2012 = vmatpush1.msra.mxu0 0.0
  %2013 = vmatprep.subr.mxu0 0.0
  %2014 = vmatpush1.msra.mxu0 0.0
  %2015 = vmatprep.subr.mxu0 0.0
  %2016 = vmatpush1.msra.mxu0 0.0
  %2017 = vmatprep.subr.mxu0 0.0
  %2018 = vmatpush1.msra.mxu0 0.0
  %2019 = vmatprep.subr.mxu0 0.0
  %2020 = vmatpush1.msra.mxu0 0.0
  %2021 = vmatprep.subr.mxu0 0.0
  %2022 = vmatpush1.msra.mxu0 0.0
  %2023 = vmatprep.subr.mxu0 0.0
  %2024 = vmatpush1.msra.mxu0 0.0
  %2025 = vmatprep.subr.mxu0 0.0
  %2026 = vmatpush1.msra.mxu0 0.0
  %2027 = vmatprep.subr.mxu0 0.0
  %2028 = vmatpush1.msra.mxu0 0.0
  %2029 = vmatprep.subr.mxu0 0.0
  %2030 = vmatpush1.msra.mxu0 0.0
  %2031 = vmatprep.subr.mxu0 0.0
  %2032 = vmatpush1.msra.mxu0 %v1635
  %2033 = vmatprep.subr.mxu0 0.0
  %2034 = vmatpush1.msra.mxu0 %v1628
  %2035 = vmatprep.subr.mxu0 0.0
  %2036 = vmatpush2.msra.mxu0 0.0
  %2037 = vmatprep.subr.mxu0 0.0
  %2038 = vmatpush2.msra.mxu0 0.0
  %2039 = vmatprep.subr.mxu0 0.0
  %2040 = vmatpush2.msra.mxu0 0.0
  %2041 = vmatprep.subr.mxu0 0.0
  %2042 = vmatpush2.msra.mxu0 0.0
  %2043 = vmatprep.subr.mxu0 0.0
  %2044 = vmatpush2.msra.mxu0 0.0
  %2045 = vmatprep.subr.mxu0 0.0
  %2046 = vmatpush2.msra.mxu0 0.0
  %2047 = vmatprep.subr.mxu0 0.0
  %2048 = vmatpush2.msra.mxu0 0.0
  %2049 = vmatprep.subr.mxu0 0.0
  %2050 = vmatpush2.msra.mxu0 0.0
  %2051 = vmatprep.subr.mxu0 0.0
  %2052 = vmatpush2.msra.mxu0 0.0
  %2053 = vmatprep.subr.mxu0 0.0
  %2054 = vmatpush2.msra.mxu0 0.0
  %2055 = vmatprep.subr.mxu0 0.0
  %2056 = vmatpush2.msra.mxu0 0.0
  %2057 = vmatprep.subr.mxu0 0.0
  %2058 = vmatpush2.msra.mxu0 0.0
  %2059 = vmatprep.subr.mxu0 0.0
  %2060 = vmatpush2.msra.mxu0 0.0
  %2061 = vmatprep.subr.mxu0 0.0
  %2062 = vmatpush2.msra.mxu0 0.0
  %2063 = vmatprep.subr.mxu0 0.0
  %2064 = vmatpush2.msra.mxu0 0.0
  %2065 = vmatprep.subr.mxu0 0.0
  %2066 = vmatpush2.msra.mxu0 0.0
  %2067 = vmatprep.mubr.f32.mxu0 0.0
  %2068 = vmatmul.mubr.f32.gmra.mxu0 %v1645
  %v2069 = vpop.f32.mrf.mxu0
  %v2070 = vpop.f32.mrf.mxu0
  %2071 = vmatprep.mubr.f32.mxu0 0.0
  %2072 = vmatmul.mubr.f32.gmra.mxu0 %v1648
  %v2073 = vpop.f32.mrf.mxu0
  %v2074 = vpop.f32.mrf.mxu0
  %2075 = vmatprep.mubr.f32.mxu0 0.0
  %2076 = vmatmul.mubr.f32.gmra.mxu0 %v1651
  %v2077 = vpop.f32.mrf.mxu0
  %v2078 = vpop.f32.mrf.mxu0
  %2079 = vmatprep.mubr.f32.mxu0 0.0
  %2080 = vmatmul.mubr.f32.gmra.mxu0 %v1654
  %v2081 = vpop.f32.mrf.mxu0
  %v2082 = vpop.f32.mrf.mxu0
  %2083 = vmatprep.mubr.f32.mxu0 0.0
  %2084 = vmatmul.mubr.f32.gmra.mxu0 %v1657
  %v2085 = vpop.f32.mrf.mxu0
  %v2086 = vadd.f32 0.0, %v2085
  %v2087 = vpop.f32.mrf.mxu0
  %2088 = vmatprep.mubr.f32.mxu0 0.0
  %2089 = vmatmul.mubr.f32.gmra.mxu0 %v1660
  %v2090 = vpop.f32.mrf.mxu0
  %v2091 = vadd.f32 0.0, %v2090
  %v2092 = vpop.f32.mrf.mxu0
  %2093 = vmatprep.mubr.f32.mxu0 0.0
  %2094 = vmatmul.mubr.f32.gmra.mxu0 %v1663
  %v2095 = vpop.f32.mrf.mxu0
  %v2096 = vadd.f32 0.0, %v2095
  %v2097 = vpop.f32.mrf.mxu0
  %2098 = vmatprep.mubr.f32.mxu0 0.0
  %2099 = vmatmul.mubr.f32.gmra.mxu0 %v1666
  %v2100 = vpop.f32.mrf.mxu0
  %v2101 = vadd.f32 0.0, %v2100
  %v2102 = vpop.f32.mrf.mxu0
  %2103 = vdwg.mxu0
  %v2104 = vadd.f32 %v1735, %v1760
  %v2105 = vadd.f32 %v1737, %v1868
  %v2106 = vadd.f32 %v1844, %v1870
  %v2107 = vadd.f32 %v1846, %v1981
  %v2108 = vadd.f32 %v1957, %v1983
  %v2109 = vadd.f32 %v1959, %v2086
  %v2110 = vadd.f32 %v1741, %v1765
  %v2111 = vadd.f32 %v1743, %v1874
  %v2112 = vadd.f32 %v1850, %v1876
  %v2113 = vadd.f32 %v1852, %v1987
  %v2114 = vadd.f32 %v1963, %v1989
  %v2115 = vadd.f32 %v1965, %v2091
  %v2116 = vadd.f32 %v1747, %v1770
  %v2117 = vadd.f32 %v1749, %v1880
  %v2118 = vadd.f32 %v1856, %v1882
  %v2119 = vadd.f32 %v1858, %v1993
  %v2120 = vadd.f32 %v1969, %v1995
  %v2121 = vadd.f32 %v1971, %v2096
  %v2122 = vadd.f32 %v1753, %v1775
  %v2123 = vadd.f32 %v1755, %v1886
  %v2124 = vadd.f32 %v1862, %v1888
  %v2125 = vadd.f32 %v1864, %v1999
  %v2126 = vadd.f32 %v1975, %v2001
  %v2127 = vadd.f32 %v1977, %v2101
  %v2128 = vld [vmem:[%s8] sm:$0xff]
  %v2129 = vld [vmem:[%s8 + $0x8] sm:$0xff]
  %v2130 = vld [vmem:[%s8 + $0x10] sm:$0xff]
  %v2131 = vld [vmem:[%s8 + $0x18] sm:$0xff]
  %2133 = vset.pattern.permute.xlu0 0
  %2134 = vperm.xlu0 %2133, %v2128
  %v2135 = vpop.permute.xlu0 %2134
  %2138 = vset.pattern.permute.xlu0 0
  %2139 = vperm.xlu0 %2138, %v2129
  %v2140 = vpop.permute.xlu0 %2139
  %2143 = vset.pattern.permute.xlu0 0
  %2144 = vperm.xlu0 %2143, %v2130
  %v2145 = vpop.permute.xlu0 %2144
  %2148 = vset.pattern.permute.xlu0 0
  %2149 = vperm.xlu0 %2148, %v2131
  %v2150 = vpop.permute.xlu0 %2149
  %v2152 = vadd.f32 %v2104, %v2135
  %v2153 = vadd.f32 %v2105, %v2135
  %v2154 = vadd.f32 %v2106, %v2135
  %v2155 = vadd.f32 %v2107, %v2135
  %v2156 = vadd.f32 %v2108, %v2135
  %v2157 = vadd.f32 %v2109, %v2135
  %v2158 = vadd.f32 %v2110, %v2140
  %v2159 = vadd.f32 %v2111, %v2140
  %v2160 = vadd.f32 %v2112, %v2140
  %v2161 = vadd.f32 %v2113, %v2140
  %v2162 = vadd.f32 %v2114, %v2140
  %v2163 = vadd.f32 %v2115, %v2140
  %v2164 = vadd.f32 %v2116, %v2145
  %v2165 = vadd.f32 %v2117, %v2145
  %v2166 = vadd.f32 %v2118, %v2145
  %v2167 = vadd.f32 %v2119, %v2145
  %v2168 = vadd.f32 %v2120, %v2145
  %v2169 = vadd.f32 %v2121, %v2145
  %v2170 = vadd.f32 %v2122, %v2150
  %v2171 = vadd.f32 %v2123, %v2150
  %v2172 = vadd.f32 %v2124, %v2150
  %v2173 = vadd.f32 %v2125, %v2150
  %v2174 = vadd.f32 %v2126, %v2150
  %v2175 = vadd.f32 %v2127, %v2150
  %v2176 = vmax.f32 %v2152, 0.0
  %v2177 = vmax.f32 %v2153, 0.0
  %v2178 = vmax.f32 %v2154, 0.0
  %v2179 = vmax.f32 %v2155, 0.0
  %v2180 = vmax.f32 %v2156, 0.0
  %v2181 = vmax.f32 %v2157, 0.0
  %v2182 = vmax.f32 %v2158, 0.0
  %v2183 = vmax.f32 %v2159, 0.0
  %v2184 = vmax.f32 %v2160, 0.0
  %v2185 = vmax.f32 %v2161, 0.0
  %v2186 = vmax.f32 %v2162, 0.0
  %v2187 = vmax.f32 %v2163, 0.0
  %v2188 = vmax.f32 %v2164, 0.0
  %v2189 = vmax.f32 %v2165, 0.0
  %v2190 = vmax.f32 %v2166, 0.0
  %v2191 = vmax.f32 %v2167, 0.0
  %v2192 = vmax.f32 %v2168, 0.0
  %v2193 = vmax.f32 %v2169, 0.0
  %v2194 = vmax.f32 %v2170, 0.0
  %v2195 = vmax.f32 %v2171, 0.0
  %v2196 = vmax.f32 %v2172, 0.0
  %v2197 = vmax.f32 %v2173, 0.0
  %v2198 = vmax.f32 %v2174, 0.0
  %v2199 = vmax.f32 %v2175, 0.0
  %v2200 = vmax.f32 %v2176, %v2177
  %v2201 = vmax.f32 %v2182, %v2183
  %v2202 = vmax.f32 %v2188, %v2189
  %v2203 = vmax.f32 %v2194, %v2195
  %v2204 = vmax.f32 %v2178, %v2179
  %v2205 = vmax.f32 %v2184, %v2185
  %v2206 = vmax.f32 %v2190, %v2191
  %v2207 = vmax.f32 %v2196, %v2197
  %v2208 = vmax.f32 %v2180, %v2181
  %v2209 = vmax.f32 %v2186, %v2187
  %v2210 = vmax.f32 %v2192, %v2193
  %v2211 = vmax.f32 %v2198, %v2199
  %v2212 = vmax.f32 %v2200, %v2204
  %v2213 = vmax.f32 %v2201, %v2205
  %v2214 = vmax.f32 %v2202, %v2206
  %v2215 = vmax.f32 %v2203, %v2207
  %v2216 = vmax.f32 %v2212, %v2208
  %v2217 = vmax.f32 %v2213, %v2209
  %v2218 = vmax.f32 %v2214, %v2210
  %v2219 = vmax.f32 %v2215, %v2211
  %v2220 = vld [vmem:[%s9] sm:$0xff]
  %v2221 = vld [vmem:[%s9 + $0x8] sm:$0xff]
  %v2222 = vld [vmem:[%s9 + $0x10] sm:$0xff]
  %v2223 = vld [vmem:[%s9 + $0x18] sm:$0xff]
  %v2224 = vld [vmem:[%s10] sm:$0xff]
  %v2225 = vld [vmem:[%s10 + $0x8] sm:$0xff]
  %v2226 = vld [vmem:[%s10 + $0x10] sm:$0xff]
  %v2227 = vld [vmem:[%s10 + $0x18] sm:$0xff]
  %v2229 = vsel %vm662, %v2224, 0
  %v2232 = vsel %vm662, %v2225, 0
  %v2235 = vsel %vm662, %v2226, 0
  %v2238 = vsel %vm662, %v2227, 0
  %2240 = vmatprep.subr.mxu0 0.0
  %2241 = vmatpush1.msra.mxu0 0.0
  %2242 = vmatprep.subr.mxu0 0.0
  %2243 = vmatpush1.msra.mxu0 0.0
  %2244 = vmatprep.subr.mxu0 0.0
  %2245 = vmatpush1.msra.mxu0 0.0
  %2246 = vmatprep.subr.mxu0 0.0
  %2247 = vmatpush1.msra.mxu0 0.0
  %2248 = vmatprep.subr.mxu0 0.0
  %2249 = vmatpush1.msra.mxu0 0.0
  %2250 = vmatprep.subr.mxu0 0.0
  %2251 = vmatpush1.msra.mxu0 0.0
  %2252 = vmatprep.subr.mxu0 0.0
  %2253 = vmatpush1.msra.mxu0 0.0
  %2254 = vmatprep.subr.mxu0 0.0
  %2255 = vmatpush1.msra.mxu0 0.0
  %2256 = vmatprep.subr.mxu0 0.0
  %2257 = vmatpush1.msra.mxu0 0.0
  %2258 = vmatprep.subr.mxu0 0.0
  %2259 = vmatpush1.msra.mxu0 0.0
  %2260 = vmatprep.subr.mxu0 0.0
  %2261 = vmatpush1.msra.mxu0 0.0
  %2262 = vmatprep.subr.mxu0 0.0
  %2263 = vmatpush1.msra.mxu0 0.0
  %2264 = vmatprep.subr.mxu0 0.0
  %2265 = vmatpush1.msra.mxu0 %v2219
  %2266 = vmatprep.subr.mxu0 0.0
  %2267 = vmatpush1.msra.mxu0 %v2218
  %2268 = vmatprep.subr.mxu0 0.0
  %2269 = vmatpush1.msra.mxu0 %v2217
  %2270 = vmatprep.subr.mxu0 0.0
  %2271 = vmatpush1.msra.mxu0 %v2216
  %2272 = vmatprep.subr.mxu0 0.0
  %2273 = vmatpush2.msra.mxu0 0.0
  %2274 = vmatprep.subr.mxu0 0.0
  %2275 = vmatpush2.msra.mxu0 0.0
  %2276 = vmatprep.subr.mxu0 0.0
  %2277 = vmatpush2.msra.mxu0 0.0
  %2278 = vmatprep.subr.mxu0 0.0
  %2279 = vmatpush2.msra.mxu0 0.0
  %2280 = vmatprep.subr.mxu0 0.0
  %2281 = vmatpush2.msra.mxu0 0.0
  %2282 = vmatprep.subr.mxu0 0.0
  %2283 = vmatpush2.msra.mxu0 0.0
  %2284 = vmatprep.subr.mxu0 0.0
  %2285 = vmatpush2.msra.mxu0 0.0
  %2286 = vmatprep.subr.mxu0 0.0
  %2287 = vmatpush2.msra.mxu0 0.0
  %2288 = vmatprep.subr.mxu0 0.0
  %2289 = vmatpush2.msra.mxu0 0.0
  %2290 = vmatprep.subr.mxu0 0.0
  %2291 = vmatpush2.msra.mxu0 0.0
  %2292 = vmatprep.subr.mxu0 0.0
  %2293 = vmatpush2.msra.mxu0 0.0
  %2294 = vmatprep.subr.mxu0 0.0
  %2295 = vmatpush2.msra.mxu0 0.0
  %2296 = vmatprep.subr.mxu0 0.0
  %2297 = vmatpush2.msra.mxu0 0.0
  %2298 = vmatprep.subr.mxu0 0.0
  %2299 = vmatpush2.msra.mxu0 0.0
  %2300 = vmatprep.subr.mxu0 0.0
  %2301 = vmatpush2.msra.mxu0 0.0
  %2302 = vmatprep.subr.mxu0 0.0
  %2303 = vmatpush2.msra.mxu0 0.0
  %2304 = vmatprep.mubr.f32.mxu0 0.0
  %2305 = vmatmul.mubr.f32.gmra.mxu0 %v2229
  %v2306 = vpop.f32.mrf.mxu0
  %v2307 = vadd.f32 0.0, %v2306
  %v2308 = vpop.f32.mrf.mxu0
  %2309 = vmatprep.mubr.f32.mxu0 0.0
  %2310 = vmatmul.mubr.f32.gmra.mxu0 %v2232
  %v2311 = vpop.f32.mrf.mxu0
  %v2312 = vadd.f32 0.0, %v2311
  %v2313 = vpop.f32.mrf.mxu0
  %2314 = vmatprep.mubr.f32.mxu0 0.0
  %2315 = vmatmul.mubr.f32.gmra.mxu0 %v2235
  %v2316 = vpop.f32.mrf.mxu0
  %v2317 = vadd.f32 0.0, %v2316
  %v2318 = vpop.f32.mrf.mxu0
  %2319 = vmatprep.mubr.f32.mxu0 0.0
  %2320 = vmatmul.mubr.f32.gmra.mxu0 %v2238
  %v2321 = vpop.f32.mrf.mxu0
  %v2322 = vadd.f32 0.0, %v2321
  %v2323 = vpop.f32.mrf.mxu0
  %2324 = vdwg.mxu0
  %v2326 = vsel %vm662, %v2220, 0
  %v2329 = vsel %vm662, %v2221, 0
  %v2332 = vsel %vm662, %v2222, 0
  %v2335 = vsel %vm662, %v2223, 0
  %2337 = vmatprep.subr.mxu0 0.0
  %2338 = vmatpush1.msra.mxu0 0.0
  %2339 = vmatprep.subr.mxu0 0.0
  %2340 = vmatpush1.msra.mxu0 0.0
  %2341 = vmatprep.subr.mxu0 0.0
  %2342 = vmatpush1.msra.mxu0 0.0
  %2343 = vmatprep.subr.mxu0 0.0
  %2344 = vmatpush1.msra.mxu0 0.0
  %2345 = vmatprep.subr.mxu0 0.0
  %2346 = vmatpush1.msra.mxu0 0.0
  %2347 = vmatprep.subr.mxu0 0.0
  %2348 = vmatpush1.msra.mxu0 0.0
  %2349 = vmatprep.subr.mxu0 0.0
  %2350 = vmatpush1.msra.mxu0 0.0
  %2351 = vmatprep.subr.mxu0 0.0
  %2352 = vmatpush1.msra.mxu0 0.0
  %2353 = vmatprep.subr.mxu0 0.0
  %2354 = vmatpush1.msra.mxu0 0.0
  %2355 = vmatprep.subr.mxu0 0.0
  %2356 = vmatpush1.msra.mxu0 0.0
  %2357 = vmatprep.subr.mxu0 0.0
  %2358 = vmatpush1.msra.mxu0 0.0
  %2359 = vmatprep.subr.mxu0 0.0
  %2360 = vmatpush1.msra.mxu0 0.0
  %2361 = vmatprep.subr.mxu0 0.0
  %2362 = vmatpush1.msra.mxu0 %v1581
  %2363 = vmatprep.subr.mxu0 0.0
  %2364 = vmatpush1.msra.mxu0 %v1580
  %2365 = vmatprep.subr.mxu0 0.0
  %2366 = vmatpush1.msra.mxu0 %v1579
  %2367 = vmatprep.subr.mxu0 0.0
  %2368 = vmatpush1.msra.mxu0 %v1578
  %2369 = vmatprep.subr.mxu0 0.0
  %2370 = vmatpush2.msra.mxu0 0.0
  %2371 = vmatprep.subr.mxu0 0.0
  %2372 = vmatpush2.msra.mxu0 0.0
  %2373 = vmatprep.subr.mxu0 0.0
  %2374 = vmatpush2.msra.mxu0 0.0
  %2375 = vmatprep.subr.mxu0 0.0
  %2376 = vmatpush2.msra.mxu0 0.0
  %2377 = vmatprep.subr.mxu0 0.0
  %2378 = vmatpush2.msra.mxu0 0.0
  %2379 = vmatprep.subr.mxu0 0.0
  %2380 = vmatpush2.msra.mxu0 0.0
  %2381 = vmatprep.subr.mxu0 0.0
  %2382 = vmatpush2.msra.mxu0 0.0
  %2383 = vmatprep.subr.mxu0 0.0
  %2384 = vmatpush2.msra.mxu0 0.0
  %2385 = vmatprep.subr.mxu0 0.0
  %2386 = vmatpush2.msra.mxu0 0.0
  %2387 = vmatprep.subr.mxu0 0.0
  %2388 = vmatpush2.msra.mxu0 0.0
  %2389 = vmatprep.subr.mxu0 0.0
  %2390 = vmatpush2.msra.mxu0 0.0
  %2391 = vmatprep.subr.mxu0 0.0
  %2392 = vmatpush2.msra.mxu0 0.0
  %2393 = vmatprep.subr.mxu0 0.0
  %2394 = vmatpush2.msra.mxu0 0.0
  %2395 = vmatprep.subr.mxu0 0.0
  %2396 = vmatpush2.msra.mxu0 0.0
  %2397 = vmatprep.subr.mxu0 0.0
  %2398 = vmatpush2.msra.mxu0 0.0
  %2399 = vmatprep.subr.mxu0 0.0
  %2400 = vmatpush2.msra.mxu0 0.0
  %2401 = vmatprep.mubr.f32.mxu0 0.0
  %2402 = vmatmul.mubr.f32.gmra.mxu0 %v2326
  %v2403 = vpop.f32.mrf.mxu0
  %v2404 = vadd.f32 %v2307, %v2403
  %v2405 = vpop.f32.mrf.mxu0
  %2406 = vmatprep.mubr.f32.mxu0 0.0
  %2407 = vmatmul.mubr.f32.gmra.mxu0 %v2329
  %v2408 = vpop.f32.mrf.mxu0
  %v2409 = vadd.f32 %v2312, %v2408
  %v2410 = vpop.f32.mrf.mxu0
  %2411 = vmatprep.mubr.f32.mxu0 0.0
  %2412 = vmatmul.mubr.f32.gmra.mxu0 %v2332
  %v2413 = vpop.f32.mrf.mxu0
  %v2414 = vadd.f32 %v2317, %v2413
  %v2415 = vpop.f32.mrf.mxu0
  %2416 = vmatprep.mubr.f32.mxu0 0.0
  %2417 = vmatmul.mubr.f32.gmra.mxu0 %v2335
  %v2418 = vpop.f32.mrf.mxu0
  %v2419 = vadd.f32 %v2322, %v2418
  %v2420 = vpop.f32.mrf.mxu0
  %2421 = vdwg.mxu0
  %v2422 = vld [vmem:[%s11] sm:$0xff]
  %v2423 = vld [vmem:[%s11 + $0x8] sm:$0xff]
  %v2424 = vld [vmem:[%s11 + $0x10] sm:$0xff]
  %v2425 = vld [vmem:[%s11 + $0x18] sm:$0xff]
  %2427 = vset.pattern.permute.xlu0 0
  %2428 = vperm.xlu0 %2427, %v2422
  %v2429 = vpop.permute.xlu0 %2428
  %2432 = vset.pattern.permute.xlu0 0
  %2433 = vperm.xlu0 %2432, %v2423
  %v2434 = vpop.permute.xlu0 %2433
  %2437 = vset.pattern.permute.xlu0 0
  %2438 = vperm.xlu0 %2437, %v2424
  %v2439 = vpop.permute.xlu0 %2438
  %2442 = vset.pattern.permute.xlu0 0
  %2443 = vperm.xlu0 %2442, %v2425
  %v2444 = vpop.permute.xlu0 %2443
  %v2446 = vadd.f32 %v2404, %v2429
  %v2447 = vadd.f32 %v2409, %v2434
  %v2448 = vadd.f32 %v2414, %v2439
  %v2449 = vadd.f32 %v2419, %v2444
  %v2450 = vmax.f32 %v2446, 0.0
  %v2451 = vmax.f32 %v2447, 0.0
  %v2452 = vmax.f32 %v2448, 0.0
  %v2453 = vmax.f32 %v2449, 0.0
  %v2454 = vld [vmem:[%s12] sm:$0xff]
  %v2455 = vld [vmem:[%s12 + $0x8] sm:$0xff]
  %v2456 = vld [vmem:[%s12 + $0x10] sm:$0xff]
  %v2457 = vld [vmem:[%s12 + $0x18] sm:$0xff]
  %2459 = vset.pattern.permute.xlu0 0
  %2460 = vperm.xlu0 %2459, %v2454
  %v2461 = vpop.permute.xlu0 %2460
  %2464 = vset.pattern.permute.xlu0 0
  %2465 = vperm.xlu0 %2464, %v2455
  %v2466 = vpop.permute.xlu0 %2465
  %2469 = vset.pattern.permute.xlu0 0
  %2470 = vperm.xlu0 %2469, %v2456
  %v2471 = vpop.permute.xlu0 %2470
  %2474 = vset.pattern.permute.xlu0 0
  %2475 = vperm.xlu0 %2474, %v2457
  %v2476 = vpop.permute.xlu0 %2475
  %v2478 = vmul.f32 %v2450, %v2461
  %v2479 = vmul.f32 %v2451, %v2466
  %v2480 = vmul.f32 %v2452, %v2471
  %v2481 = vmul.f32 %v2453, %v2476
  %v2482 = vadd.f32 %v2478, %v2479
  %v2483 = vadd.f32 %v2482, %v2480
  %v2484 = vadd.f32 %v2483, %v2481
  %v2485 = vrot.slane %v2484, 4
  %v2486 = vadd.f32 %v2484, %v2485
  %v2487 = vrot.slane %v2486, 2
  %v2488 = vadd.f32 %v2486, %v2487
  %v2489 = vrot.slane %v2488, 1
  %v2490 = vadd.f32 %v2488, %v2489
  %v2491 = vld [vmem:[#allocation2] sm:$0x1]
  %2493 = vset.pattern.permute.xlu0 0
  %2494 = vperm.xlu0 %2493, %v2491
  %v2495 = vpop.permute.xlu0 %2494
  %v2497 = vlaneseq
  %v2498 = vshrl.u32 %v2497, 7
  %v2499 = vsub.s32 0, %v2498
  %v2500 = vrot.slane %v2495, %v2499
  %v2501 = vadd.f32 %v2490, %v2500
  %v2502 = vxor.u32 %v2501, 2147483648
  %v2503 = vmul.f32 %v2502, 1.442695
  %v2504 = vpow.pop %v2503
  %v2505 = vadd.f32 %v2504, 1.0
  %v2506 = vrcp.pop %v2505
  %v2507 = vmul.f32 1.0, %v2506
  %2508 = vst [vmem:[%s14] sm:$0x1] %v2507
  // Predicated region
  $region58: #{multi_cnn_text_forward.1} parent=0 // pred_check
    _
  $region59: #{multi_cnn_text_forward.1} parent=0 // pred_check_branch
    %2510 = sbr.rel (0) target = $region61
  $region60: #{multi_cnn_text_forward.1} parent=0 // pred_region
    _
  $region61: #{multi_cnn_text_forward.1} parent=0 // pred_fallthru
    _
  // Predicated region
  $region62: #{multi_cnn_text_forward.1} parent=0 // pred_check
    _
  $region63: #{multi_cnn_text_forward.1} parent=0 // pred_check_branch
    %2512 = sbr.rel (0) target = $region65
  $region64: #{multi_cnn_text_forward.1} parent=0 // pred_region
    _
  $region65: #{multi_cnn_text_forward.1} parent=0 // pred_fallthru
    _

</llo_original>
